<compile_context>
chip_gen: v6e
topology: v6e:2x2x1
jax: 0.10.0
libtpu: 0.0.40
codegen_flags: <defaults>
</compile_context>

<pallas_src>
import functools
from typing import NamedTuple

import numpy as np
import jax
import jax.numpy as jnp
from jax.experimental import pallas as pl
from jax.experimental.pallas import tpu as pltpu

PARAM_DTYPE = jnp.bfloat16  # MXU-native on v5e/v6e/v7x; f32 accumulation is kept.


class AEDims(NamedTuple):
    d: int        # input_dim
    h: int        # hidden_dim
    z: int        # z_dim
    p: int        # per-path padded feature width (multiple of 128)
    compact: bool  # all four outputs fit in one 128-lane slab


def _leaky_relu(x, slope=0.1):
    return jnp.where(x >= 0, x, slope * x)


def _round_up(n, m):
    return ((n + m - 1) // m) * m


# --------------------------------------------------------------------------------------
# One-time, host-side parameter packing (NOT part of the jitted per-call path).
# --------------------------------------------------------------------------------------
def pack_ae_params(path1_params, path2_params, param_dtype=PARAM_DTYPE):
    """Pack both paths' 12 linears into block-diagonal [6,2P,2P] weights + [6,2P] biases.

    Column placement of the z (layer 2) and xhat (layer 5) weights is chosen so that,
    when possible, the four outputs land directly at their final lanes of a single
    128-wide output slab: [z1 | xhat1 | z2 | xhat2].
    """
    enc1, dec1 = path1_params
    enc2, dec2 = path2_params
    D, H = enc1[0].shape
    Z = enc1[4].shape[1]
    P = _round_up(max(D, H, Z), 128)
    compact = 2 * (Z + D) <= 128
    dims = AEDims(d=D, h=H, z=Z, p=P, compact=compact)

    W = np.zeros((6, 2 * P, 2 * P), np.float32)
    Bv = np.zeros((6, 2 * P), np.float32)

    for p, (enc, dec) in enumerate(((enc1, dec1), (enc2, dec2))):
        x_off = p * D                                   # layer-0 input rows
        h_off = p * P                                   # hidden lanes (block-diag)
        z_off = p * (Z + D) if compact else p * P       # latent lanes (== output lanes)
        y_off = Z + p * (Z + D) if compact else p * P   # xhat output lanes
        layers = (
            (enc[0], enc[1], x_off, h_off),   # enc Linear(D, H)
            (enc[2], enc[3], h_off, h_off),   # enc Linear(H, H)
            (enc[4], enc[5], h_off, z_off),   # enc Linear(H, Z)
            (dec[0], dec[1], z_off, h_off),   # dec Linear(Z, H)
            (dec[2], dec[3], h_off, h_off),   # dec Linear(H, H)
            (dec[4], dec[5], h_off, y_off),   # dec Linear(H, D)
        )
        for i, (w, b, r0, c0) in enumerate(layers):
            fi, fo = w.shape
            W[i, r0:r0 + fi, c0:c0 + fo] = np.asarray(w, np.float32)
            Bv[i, c0:c0 + fo] = np.asarray(b, np.float32)

    w_all = jnp.asarray(W, dtype=param_dtype)    # bf16 weights for the MXU
    b_all = jnp.asarray(Bv, dtype=jnp.float32)   # biases added in f32
    return w_all, b_all, dims


# --------------------------------------------------------------------------------------
# Fused kernel: both paths, all 6 layers per path, one (batch-tile) grid step.
# --------------------------------------------------------------------------------------
def _ae_fused_kernel(x1_ref, x2_ref, w_ref, b_ref, out_ref, *, dims):
    """x1_ref/x2_ref: [BT, D] (true lane width)
       w_ref: [6, 2P, 2P] block-diagonal bf16 weights   b_ref: [6, 2P] f32 biases
       out_ref: [BT, 128] compact slab (z1|xhat1|z2|xhat2) or [BT, 4P] fallback."""
    D, Z, P = dims.d, dims.z, dims.p

    def linear(h, i):
        acc = jnp.dot(h.astype(w_ref.dtype), w_ref[i],
                      preferred_element_type=jnp.float32)
        return acc + b_ref[i:i + 1, :]

    # Layer 0: contract the two un-padded D-wide inputs against their packed rows.
    x1 = x1_ref[...].astype(w_ref.dtype)
    x2 = x2_ref[...].astype(w_ref.dtype)
    h = (jnp.dot(x1, w_ref[0, 0:D, :], preferred_element_type=jnp.float32)
         + jnp.dot(x2, w_ref[0, D:2 * D, :], preferred_element_type=jnp.float32)
         + b_ref[0:1, :])
    h = _leaky_relu(h)

    # encoder (cont.): LeakyReLU -> [Drop] -> Linear -> LeakyReLU -> [Drop] -> Linear
    h = _leaky_relu(linear(h, 1))
    z = linear(h, 2)

    # decoder: LeakyReLU -> [Drop] -> Linear -> LeakyReLU -> [Drop] -> Linear
    #          -> LeakyReLU -> Linear -> Sigmoid
    d = _leaky_relu(z)
    d = _leaky_relu(linear(d, 3))
    d = _leaky_relu(linear(d, 4))
    xhat = jax.nn.sigmoid(linear(d, 5))

    if dims.compact:
        # z / xhat weight columns were already placed at their final output lanes at
        # pack time, so a lane-iota select merges them; one unmasked 128-lane store.
        lane = jax.lax.broadcasted_iota(jnp.int32, z.shape, 1)
        z_lanes = (lane < Z) | ((lane >= Z + D) & (lane < 2 * Z + D))
        merged = jnp.where(z_lanes, z, xhat)
        out_ref[...] = merged[:, :out_ref.shape[-1]].astype(out_ref.dtype)
    else:
        out_ref[:, :2 * P] = z.astype(out_ref.dtype)
        out_ref[:, 2 * P:] = xhat.astype(out_ref.dtype)


def ae_forward(x1, x2, w_all, b_all, dims, batch_tile=2048):
    B, D = x1.shape
    assert D == dims.d
    P = dims.p

    BT = min(_round_up(batch_tile, 8), _round_up(B, 8))
    Bp = _round_up(B, BT)
    n_bt = Bp // BT
    if Bp != B:   # only batch padding; inputs keep their true lane width D
        x1 = jnp.pad(x1, ((0, Bp - B), (0, 0)))
        x2 = jnp.pad(x2, ((0, Bp - B), (0, 0)))

    out_w = 128 if dims.compact else 4 * P
    kernel = functools.partial(_ae_fused_kernel, dims=dims)

    out = pl.pallas_call(
        kernel,
        out_shape=jax.ShapeDtypeStruct((Bp, out_w), jnp.float32),
        grid=(n_bt,),
        in_specs=[
            pl.BlockSpec((BT, D), lambda b: (b, 0)),
            pl.BlockSpec((BT, D), lambda b: (b, 0)),
            # Constant index maps: weights/biases are DMA'd once and stay resident.
            pl.BlockSpec((6, 2 * P, 2 * P), lambda b: (0, 0, 0)),
            pl.BlockSpec((6, 2 * P), lambda b: (0, 0)),
        ],
        out_specs=pl.BlockSpec((BT, out_w), lambda b: (b, 0)),
        compiler_params=pltpu.CompilerParams(
            dimension_semantics=("parallel",)),
    )(x1, x2, w_all, b_all)

    Z = dims.z
    if dims.compact:
        z1 = out[:B, 0:Z]
        xhat1 = out[:B, Z:Z + D]
        z2 = out[:B, Z + D:2 * Z + D]
        xhat2 = out[:B, 2 * Z + D:2 * (Z + D)]
    else:
        z1 = out[:B, 0:Z]
        z2 = out[:B, P:P + Z]
        xhat1 = out[:B, 2 * P:2 * P + D]
        xhat2 = out[:B, 3 * P:3 * P + D]
    return z1, z2, xhat1, xhat2


ae_forward_jit = jax.jit(ae_forward, static_argnames=("dims", "batch_tile"))


# --------------------------------------------------------------------------------------
# Parameter init (mimics nn.Linear default: uniform +/- 1/sqrt(fan_in)) and reference.
# --------------------------------------------------------------------------------------
def init_linear(key, fan_in, fan_out):
    kw, kb = jax.random.split(key)
    bound = 1.0 / jnp.sqrt(jnp.float32(fan_in))
    w = jax.random.uniform(kw, (fan_in, fan_out), jnp.float32, -bound, bound)
    b = jax.random.uniform(kb, (fan_out,), jnp.float32, -bound, bound)
    return w, b


def init_ae_params(key, input_dim, hidden_dim, z_dim):
    keys = jax.random.split(key, 12)

    def make_path(ks):
        ew1, eb1 = init_linear(ks[0], input_dim, hidden_dim)
        ew2, eb2 = init_linear(ks[1], hidden_dim, hidden_dim)
        ew3, eb3 = init_linear(ks[2], hidden_dim, z_dim)
        dw1, db1 = init_linear(ks[3], z_dim, hidden_dim)
        dw2, db2 = init_linear(ks[4], hidden_dim, hidden_dim)
        dw3, db3 = init_linear(ks[5], hidden_dim, input_dim)
        enc = (ew1, eb1, ew2, eb2, ew3, eb3)
        dec = (dw1, db1, dw2, db2, dw3, db3)
        return enc, dec

    return make_path(keys[:6]), make_path(keys[6:])


def _ref_forward(x, enc, dec, mxu_dtype=jnp.float32):
    """Pure-JAX reference (eval-mode dropout). `mxu_dtype` mirrors the kernel's matmul
    input precision (bf16 inputs, f32 accumulation); elementwise math stays f32."""
    def lin(h, w, b):
        return jnp.dot(h.astype(mxu_dtype), w.astype(mxu_dtype),
                       preferred_element_type=jnp.float32) + b

    ew1, eb1, ew2, eb2, ew3, eb3 = enc
    dw1, db1, dw2, db2, dw3, db3 = dec
    h = _leaky_relu(lin(x, ew1, eb1))
    h = _leaky_relu(lin(h, ew2, eb2))
    z = lin(h, ew3, eb3)
    d = _leaky_relu(z)
    d = _leaky_relu(lin(d, dw1, db1))
    d = _leaky_relu(lin(d, dw2, db2))
    xhat = jax.nn.sigmoid(lin(d, dw3, db3))
    return z, xhat


if __name__ == "__main__":
    B = 8
    INPUT_DIM = 32
    HIDDEN_DIM = 32
    Z_DIM = 16

    key = jax.random.PRNGKey(0)
    kx1, kx2, kp = jax.random.split(key, 3)
    x1 = jax.random.normal(kx1, (B, INPUT_DIM), jnp.float32)
    x2 = jax.random.normal(kx2, (B, INPUT_DIM), jnp.float32)

    path1, path2 = init_ae_params(kp, INPUT_DIM, HIDDEN_DIM, Z_DIM)

    # Pack once, outside the hot path.
    w_all, b_all, dims = pack_ae_params(path1, path2)

    z1, z2, xhat1, xhat2 = ae_forward_jit(x1, x2, w_all, b_all, dims=dims)
    jax.block_until_ready((z1, z2, xhat1, xhat2))

    # Correctness vs a precision-matched pure-JAX reference (eval-mode forward,
    # bf16 matmul inputs / f32 accumulation, same as the kernel).
    z1_ref, xhat1_ref = _ref_forward(x1, *path1, mxu_dtype=PARAM_DTYPE)
    z2_ref, xhat2_ref = _ref_forward(x2, *path2, mxu_dtype=PARAM_DTYPE)

    assert z1.shape == (B, Z_DIM) and xhat1.shape == (B, INPUT_DIM)
    assert z2.shape == (B, Z_DIM) and xhat2.shape == (B, INPUT_DIM)
    assert jnp.allclose(z1, z1_ref, atol=1e-3, rtol=1e-3), "z1 mismatch"
    assert jnp.allclose(z2, z2_ref, atol=1e-3, rtol=1e-3), "z2 mismatch"
    assert jnp.allclose(xhat1, xhat1_ref, atol=1e-3, rtol=1e-3), "xhat1 mismatch"
    assert jnp.allclose(xhat2, xhat2_ref, atol=1e-3, rtol=1e-3), "xhat2 mismatch"

    print("KERNEL_OK")
</pallas_src>

<mosaic_0001>
module attributes {stable_mosaic.version = 11 : i64} {
  func.func @_ae_fused_kernel(%arg0: i32, %arg1: memref<8x32xf32, #tpu.memory_space<vmem>>, %arg2: memref<8x32xf32, #tpu.memory_space<vmem>>, %arg3: memref<6x256x256xbf16, #tpu.memory_space<vmem>>, %arg4: memref<6x256xf32, #tpu.memory_space<vmem>>, %arg5: memref<8x128xf32, #tpu.memory_space<vmem>>) attributes {dimension_semantics = [#tpu.dimension_semantics<parallel>], iteration_bounds = array<i64: 1>, scalar_prefetch = 0 : i64, scratch_operands = 0 : i64, tpu.core_type = #tpu.core_type<tc>, window_params = [{transform_indices = @transform_0, window_bounds = array<i64: 8, 32>}, {transform_indices = @transform_1, window_bounds = array<i64: 8, 32>}, {pipeline_mode = #tpu.pipeline_mode<synchronous>, transform_indices = @transform_2, window_bounds = array<i64: 6, 256, 256>}, {pipeline_mode = #tpu.pipeline_mode<synchronous>, transform_indices = @transform_3, window_bounds = array<i64: 6, 256>}, {transform_indices = @transform_4, window_bounds = array<i64: 8, 128>}]} {
    %c0 = arith.constant 0 : index
    %c0_0 = arith.constant 0 : index
    %0 = vector.load %arg1[%c0, %c0_0] : memref<8x32xf32, #tpu.memory_space<vmem>>, vector<8x32xf32>
    %1 = arith.truncf %0 : vector<8x32xf32> to vector<8x32xbf16>
    %c0_1 = arith.constant 0 : index
    %c0_2 = arith.constant 0 : index
    %2 = vector.load %arg2[%c0_1, %c0_2] : memref<8x32xf32, #tpu.memory_space<vmem>>, vector<8x32xf32>
    %3 = arith.truncf %2 : vector<8x32xf32> to vector<8x32xbf16>
    %c0_3 = arith.constant 0 : index
    %c0_4 = arith.constant 0 : index
    %c0_5 = arith.constant 0 : index
    %4 = vector.load %arg3[%c0_3, %c0_4, %c0_5] : memref<6x256x256xbf16, #tpu.memory_space<vmem>>, vector<1x32x256xbf16>
    %5 = vector.shape_cast %4 : vector<1x32x256xbf16> to vector<32x256xbf16>
    %cst = arith.constant dense<0.000000e+00> : vector<8x256xf32>
    %6 = tpu.matmul %1, %5, %cst {dimension_numbers = #tpu.dot_dimension_numbers<[1], [0], [0], [1], [0, 0, 1, 1], [], []>} : vector<8x32xbf16>, vector<32x256xbf16>, vector<8x256xf32> -> vector<8x256xf32>
    %c0_6 = arith.constant 0 : index
    %c32 = arith.constant 32 : index
    %c0_7 = arith.constant 0 : index
    %7 = vector.load %arg3[%c0_6, %c32, %c0_7] : memref<6x256x256xbf16, #tpu.memory_space<vmem>>, vector<1x32x256xbf16>
    %8 = vector.shape_cast %7 : vector<1x32x256xbf16> to vector<32x256xbf16>
    %cst_8 = arith.constant dense<0.000000e+00> : vector<8x256xf32>
    %9 = tpu.matmul %3, %8, %cst_8 {dimension_numbers = #tpu.dot_dimension_numbers<[1], [0], [0], [1], [0, 0, 1, 1], [], []>} : vector<8x32xbf16>, vector<32x256xbf16>, vector<8x256xf32> -> vector<8x256xf32>
    %10 = arith.addf %6, %9 : vector<8x256xf32>
    %c0_9 = arith.constant 0 : index
    %c0_10 = arith.constant 0 : index
    %11 = vector.load %arg4[%c0_9, %c0_10] : memref<6x256xf32, #tpu.memory_space<vmem>>, vector<1x256xf32>
    %12 = vector.broadcast %11 : vector<1x256xf32> to vector<8x256xf32>
    %13 = arith.addf %10, %12 : vector<8x256xf32>
    %cst_11 = arith.constant 0.000000e+00 : f32
    %14 = vector.broadcast %cst_11 : f32 to vector<8x256xf32>
    %15 = arith.cmpf oge, %13, %14 : vector<8x256xf32>
    %cst_12 = arith.constant 1.000000e-01 : f32
    %16 = vector.broadcast %cst_12 : f32 to vector<8x256xf32>
    %17 = arith.mulf %16, %13 : vector<8x256xf32>
    %18 = arith.select %15, %13, %17 : vector<8x256xi1>, vector<8x256xf32>
    %19 = arith.truncf %18 : vector<8x256xf32> to vector<8x256xbf16>
    %c1 = arith.constant 1 : index
    %c0_13 = arith.constant 0 : index
    %c0_14 = arith.constant 0 : index
    %20 = vector.load %arg3[%c1, %c0_13, %c0_14] : memref<6x256x256xbf16, #tpu.memory_space<vmem>>, vector<1x256x256xbf16>
    %21 = vector.shape_cast %20 : vector<1x256x256xbf16> to vector<256x256xbf16>
    %cst_15 = arith.constant dense<0.000000e+00> : vector<8x256xf32>
    %22 = tpu.matmul %19, %21, %cst_15 {dimension_numbers = #tpu.dot_dimension_numbers<[1], [0], [0], [1], [0, 0, 1, 1], [], []>} : vector<8x256xbf16>, vector<256x256xbf16>, vector<8x256xf32> -> vector<8x256xf32>
    %c1_16 = arith.constant 1 : index
    %c0_17 = arith.constant 0 : index
    %23 = vector.load %arg4[%c1_16, %c0_17] : memref<6x256xf32, #tpu.memory_space<vmem>>, vector<1x256xf32>
    %24 = vector.broadcast %23 : vector<1x256xf32> to vector<8x256xf32>
    %25 = arith.addf %22, %24 : vector<8x256xf32>
    %cst_18 = arith.constant 0.000000e+00 : f32
    %26 = vector.broadcast %cst_18 : f32 to vector<8x256xf32>
    %27 = arith.cmpf oge, %25, %26 : vector<8x256xf32>
    %cst_19 = arith.constant 1.000000e-01 : f32
    %28 = vector.broadcast %cst_19 : f32 to vector<8x256xf32>
    %29 = arith.mulf %28, %25 : vector<8x256xf32>
    %30 = arith.select %27, %25, %29 : vector<8x256xi1>, vector<8x256xf32>
    %31 = arith.truncf %30 : vector<8x256xf32> to vector<8x256xbf16>
    %c2 = arith.constant 2 : index
    %c0_20 = arith.constant 0 : index
    %c0_21 = arith.constant 0 : index
    %32 = vector.load %arg3[%c2, %c0_20, %c0_21] : memref<6x256x256xbf16, #tpu.memory_space<vmem>>, vector<1x256x256xbf16>
    %33 = vector.shape_cast %32 : vector<1x256x256xbf16> to vector<256x256xbf16>
    %cst_22 = arith.constant dense<0.000000e+00> : vector<8x256xf32>
    %34 = tpu.matmul %31, %33, %cst_22 {dimension_numbers = #tpu.dot_dimension_numbers<[1], [0], [0], [1], [0, 0, 1, 1], [], []>} : vector<8x256xbf16>, vector<256x256xbf16>, vector<8x256xf32> -> vector<8x256xf32>
    %c2_23 = arith.constant 2 : index
    %c0_24 = arith.constant 0 : index
    %35 = vector.load %arg4[%c2_23, %c0_24] : memref<6x256xf32, #tpu.memory_space<vmem>>, vector<1x256xf32>
    %36 = vector.broadcast %35 : vector<1x256xf32> to vector<8x256xf32>
    %37 = arith.addf %34, %36 : vector<8x256xf32>
    %cst_25 = arith.constant 0.000000e+00 : f32
    %38 = vector.broadcast %cst_25 : f32 to vector<8x256xf32>
    %39 = arith.cmpf oge, %37, %38 : vector<8x256xf32>
    %cst_26 = arith.constant 1.000000e-01 : f32
    %40 = vector.broadcast %cst_26 : f32 to vector<8x256xf32>
    %41 = arith.mulf %40, %37 : vector<8x256xf32>
    %42 = arith.select %39, %37, %41 : vector<8x256xi1>, vector<8x256xf32>
    %43 = arith.truncf %42 : vector<8x256xf32> to vector<8x256xbf16>
    %c3 = arith.constant 3 : index
    %c0_27 = arith.constant 0 : index
    %c0_28 = arith.constant 0 : index
    %44 = vector.load %arg3[%c3, %c0_27, %c0_28] : memref<6x256x256xbf16, #tpu.memory_space<vmem>>, vector<1x256x256xbf16>
    %45 = vector.shape_cast %44 : vector<1x256x256xbf16> to vector<256x256xbf16>
    %cst_29 = arith.constant dense<0.000000e+00> : vector<8x256xf32>
    %46 = tpu.matmul %43, %45, %cst_29 {dimension_numbers = #tpu.dot_dimension_numbers<[1], [0], [0], [1], [0, 0, 1, 1], [], []>} : vector<8x256xbf16>, vector<256x256xbf16>, vector<8x256xf32> -> vector<8x256xf32>
    %c3_30 = arith.constant 3 : index
    %c0_31 = arith.constant 0 : index
    %47 = vector.load %arg4[%c3_30, %c0_31] : memref<6x256xf32, #tpu.memory_space<vmem>>, vector<1x256xf32>
    %48 = vector.broadcast %47 : vector<1x256xf32> to vector<8x256xf32>
    %49 = arith.addf %46, %48 : vector<8x256xf32>
    %cst_32 = arith.constant 0.000000e+00 : f32
    %50 = vector.broadcast %cst_32 : f32 to vector<8x256xf32>
    %51 = arith.cmpf oge, %49, %50 : vector<8x256xf32>
    %cst_33 = arith.constant 1.000000e-01 : f32
    %52 = vector.broadcast %cst_33 : f32 to vector<8x256xf32>
    %53 = arith.mulf %52, %49 : vector<8x256xf32>
    %54 = arith.select %51, %49, %53 : vector<8x256xi1>, vector<8x256xf32>
    %55 = arith.truncf %54 : vector<8x256xf32> to vector<8x256xbf16>
    %c4 = arith.constant 4 : index
    %c0_34 = arith.constant 0 : index
    %c0_35 = arith.constant 0 : index
    %56 = vector.load %arg3[%c4, %c0_34, %c0_35] : memref<6x256x256xbf16, #tpu.memory_space<vmem>>, vector<1x256x256xbf16>
    %57 = vector.shape_cast %56 : vector<1x256x256xbf16> to vector<256x256xbf16>
    %cst_36 = arith.constant dense<0.000000e+00> : vector<8x256xf32>
    %58 = tpu.matmul %55, %57, %cst_36 {dimension_numbers = #tpu.dot_dimension_numbers<[1], [0], [0], [1], [0, 0, 1, 1], [], []>} : vector<8x256xbf16>, vector<256x256xbf16>, vector<8x256xf32> -> vector<8x256xf32>
    %c4_37 = arith.constant 4 : index
    %c0_38 = arith.constant 0 : index
    %59 = vector.load %arg4[%c4_37, %c0_38] : memref<6x256xf32, #tpu.memory_space<vmem>>, vector<1x256xf32>
    %60 = vector.broadcast %59 : vector<1x256xf32> to vector<8x256xf32>
    %61 = arith.addf %58, %60 : vector<8x256xf32>
    %cst_39 = arith.constant 0.000000e+00 : f32
    %62 = vector.broadcast %cst_39 : f32 to vector<8x256xf32>
    %63 = arith.cmpf oge, %61, %62 : vector<8x256xf32>
    %cst_40 = arith.constant 1.000000e-01 : f32
    %64 = vector.broadcast %cst_40 : f32 to vector<8x256xf32>
    %65 = arith.mulf %64, %61 : vector<8x256xf32>
    %66 = arith.select %63, %61, %65 : vector<8x256xi1>, vector<8x256xf32>
    %67 = arith.truncf %66 : vector<8x256xf32> to vector<8x256xbf16>
    %c5 = arith.constant 5 : index
    %c0_41 = arith.constant 0 : index
    %c0_42 = arith.constant 0 : index
    %68 = vector.load %arg3[%c5, %c0_41, %c0_42] : memref<6x256x256xbf16, #tpu.memory_space<vmem>>, vector<1x256x256xbf16>
    %69 = vector.shape_cast %68 : vector<1x256x256xbf16> to vector<256x256xbf16>
    %cst_43 = arith.constant dense<0.000000e+00> : vector<8x256xf32>
    %70 = tpu.matmul %67, %69, %cst_43 {dimension_numbers = #tpu.dot_dimension_numbers<[1], [0], [0], [1], [0, 0, 1, 1], [], []>} : vector<8x256xbf16>, vector<256x256xbf16>, vector<8x256xf32> -> vector<8x256xf32>
    %c5_44 = arith.constant 5 : index
    %c0_45 = arith.constant 0 : index
    %71 = vector.load %arg4[%c5_44, %c0_45] : memref<6x256xf32, #tpu.memory_space<vmem>>, vector<1x256xf32>
    %72 = vector.broadcast %71 : vector<1x256xf32> to vector<8x256xf32>
    %73 = arith.addf %70, %72 : vector<8x256xf32>
    %74 = arith.negf %73 : vector<8x256xf32>
    %75 = math.exp %74 : vector<8x256xf32>
    %cst_46 = arith.constant 1.000000e+00 : f32
    %76 = vector.broadcast %cst_46 : f32 to vector<8x256xf32>
    %77 = arith.addf %76, %75 : vector<8x256xf32>
    %78 = arith.divf %76, %77 : vector<8x256xf32>
    %79 = tpu.iota {dimensions = array<i32: 1>} : vector<8x256xi32>
    %c16_i32 = arith.constant 16 : i32
    %80 = vector.broadcast %c16_i32 : i32 to vector<8x256xi32>
    %81 = arith.cmpi slt, %79, %80 : vector<8x256xi32>
    %c48_i32 = arith.constant 48 : i32
    %82 = vector.broadcast %c48_i32 : i32 to vector<8x256xi32>
    %83 = arith.cmpi sge, %79, %82 : vector<8x256xi32>
    %c64_i32 = arith.constant 64 : i32
    %84 = vector.broadcast %c64_i32 : i32 to vector<8x256xi32>
    %85 = arith.cmpi slt, %79, %84 : vector<8x256xi32>
    %86 = arith.andi %83, %85 : vector<8x256xi1>
    %87 = arith.ori %81, %86 : vector<8x256xi1>
    %88 = arith.select %87, %37, %78 : vector<8x256xi1>, vector<8x256xf32>
    %89 = vector.extract_strided_slice %88 {offsets = [0, 0], sizes = [8, 128], strides = [1, 1]} : vector<8x256xf32> to vector<8x128xf32>
    %c0_47 = arith.constant 0 : index
    %c0_48 = arith.constant 0 : index
    %90 = vector.load %arg5[%c0_47, %c0_48] : memref<8x128xf32, #tpu.memory_space<vmem>>, vector<8x128xf32>
    tpu.vector_store %arg5[%c0_47, %c0_48], %89 {strides = array<i32>} : memref<8x128xf32, #tpu.memory_space<vmem>>, vector<8x128xf32>,
    return
  }
  func.func @transform_0(%arg0: i32) -> (i32, i32) {
    %c0_i32 = arith.constant 0 : i32
    %c0_i32_0 = arith.constant 0 : i32
    return %arg0, %c0_i32 : i32, i32
  }
  func.func @transform_1(%arg0: i32) -> (i32, i32) {
    %c0_i32 = arith.constant 0 : i32
    %c0_i32_0 = arith.constant 0 : i32
    return %arg0, %c0_i32 : i32, i32
  }
  func.func @transform_2(%arg0: i32) -> (i32, i32, i32) {
    %c0_i32 = arith.constant 0 : i32
    %c0_i32_0 = arith.constant 0 : i32
    %c0_i32_1 = arith.constant 0 : i32
    %c0_i32_2 = arith.constant 0 : i32
    return %c0_i32, %c0_i32_0, %c0_i32_1 : i32, i32, i32
  }
  func.func @transform_3(%arg0: i32) -> (i32, i32) {
    %c0_i32 = arith.constant 0 : i32
    %c0_i32_0 = arith.constant 0 : i32
    %c0_i32_1 = arith.constant 0 : i32
    return %c0_i32, %c0_i32_0 : i32, i32
  }
  func.func @transform_4(%arg0: i32) -> (i32, i32) {
    %c0_i32 = arith.constant 0 : i32
    %c0_i32_0 = arith.constant 0 : i32
    return %arg0, %c0_i32 : i32, i32
  }
}

</mosaic_0001>

<llo_original>
// kernel: ae_forward.1
$region0: #{ae_forward.1}
  #allocation0 [shape = 'u32[]', space=smem, size = 0x4, offset = 0x4, fixed_abs, tag = 'smem constant byte address 0x4 - core index']
  #allocation1 [shape = 'u32[144,128]{1,0:T(1,128)}', space=vmem, size = 0x12000, scoped, tag = 'internal scratch']
  %s0 = inlined_call_operand.hbm [shape: f32[8,32], index: 0, kind: input, shape index: {}]
  %s1 = inlined_call_operand.hbm [shape: f32[8,32], index: 1, kind: input, shape index: {}]
  %s2 = inlined_call_operand.hbm [shape: bf16[6,256,256], index: 2, kind: input, shape index: {}]
  %s3 = inlined_call_operand.hbm [shape: f32[6,256], index: 3, kind: input, shape index: {}]
  %s4 = inlined_call_operand.vmem [shape: f32[8,128], index: 4, kind: output, shape index: {}]
  %s5 = sld [smem:[#allocation0]]
  $region42: #{ae_forward.1} parent=0
    _
  %s7 = ssub.s32 1, %s5
  %s8 = scalar_select 0, %s7, %s5
  $region1: #{ae_forward.1} parent=0
    #allocation2 [shape = 'u8[4096]{0}', space=vmem, size = 0x1000, scoped, tag = 'input window, operand 0, single buffered']
    #allocation3 [shape = 's32[1]{0}', space=sflag, size = 0x4, scoped, tag = 'scoped memory for ae_forward.1']
    #allocation4 [shape = 'u8[4096]{0}', space=vmem, size = 0x1000, scoped, tag = 'input window, operand 1, single buffered']
    #allocation5 [shape = 's32[1]{0}', space=sflag, size = 0x4, scoped, tag = 'scoped memory for ae_forward.1']
    #allocation6 [shape = 'u8[786432]{0}', space=vmem, size = 0xc0000, scoped, tag = 'input window, operand 2, single buffered']
    #allocation7 [shape = 'u8[8192]{0}', space=vmem, size = 0x2000, scoped, tag = 'input window, operand 3, single buffered']
    #allocation8 [shape = 's32[1]{0}', space=sflag, size = 0x4, scoped, tag = 'scoped memory for ae_forward.1']
    %9 = vsyncpa [#allocation3], 0
    %10 = vsyncpa [#allocation5], 0
    %11 = vsyncpa [#allocation8], 0
    // Predicated region
    $region2: #{ae_forward.1} parent=1 // pred_check
      _
    $region3: #{ae_forward.1} parent=1 // pred_check_branch
      %13 = sbr.rel (0) target = $region5
    $region4: #{ae_forward.1} parent=1 // pred_region
      %s15 = ssub.s32 128, 128
      %16 = vsyncadd [#allocation3], %s15
      %s18 = sshll.u32 [#allocation2], 4
      %s19 = int_to_ptr.vmem [resolvable:$true] %s18
      %21 = dma.hbm_to_vmem [thread:$0]  %s0, 128, %s19, [#allocation3]
    $region5: #{ae_forward.1} parent=1 // pred_fallthru
      _
    // Predicated region
    $region6: #{ae_forward.1} parent=1 // pred_check
      _
    $region7: #{ae_forward.1} parent=1 // pred_check_branch
      %23 = sbr.rel (0) target = $region9
    $region8: #{ae_forward.1} parent=1 // pred_region
      %s25 = ssub.s32 128, 128
      %26 = vsyncadd [#allocation5], %s25
      %s28 = sshll.u32 [#allocation4], 4
      %s29 = int_to_ptr.vmem [resolvable:$true] %s28
      %31 = dma.hbm_to_vmem [thread:$0]  %s1, 128, %s29, [#allocation5]
    $region9: #{ae_forward.1} parent=1 // pred_fallthru
      _
    // Predicated region
    $region10: #{ae_forward.1} parent=1 // pred_check
      _
    $region11: #{ae_forward.1} parent=1 // pred_check_branch
      %33 = sbr.rel (0) target = $region13
    $region12: #{ae_forward.1} parent=1 // pred_region
      %s35 = ssub.s32 24576, 24576
      %36 = vsyncadd [#allocation5], %s35
      %s37 = sshll.u32 [#allocation6], 4
      %s38 = int_to_ptr.vmem [resolvable:$true] %s37
      %43 = dma.hbm_to_vmem [thread:$0]  %s2, 24576, %s38, [#allocation5], 128, 128, 8
    $region13: #{ae_forward.1} parent=1 // pred_fallthru
      _
    // Predicated region
    $region14: #{ae_forward.1} parent=1 // pred_check
      _
    $region15: #{ae_forward.1} parent=1 // pred_check_branch
      %45 = sbr.rel (0) target = $region17
    $region16: #{ae_forward.1} parent=1 // pred_region
      %s47 = ssub.s32 256, 256
      %48 = vsyncadd [#allocation8], %s47
      %s50 = sshll.u32 [#allocation7], 4
      %s51 = int_to_ptr.vmem [resolvable:$true] %s50
      %53 = dma.hbm_to_vmem [thread:$0]  %s3, 256, %s51, [#allocation8]
    $region17: #{ae_forward.1} parent=1 // pred_fallthru
      _
    // Predicated region
    $region18: #{ae_forward.1} parent=1 // pred_check
      _
    $region19: #{ae_forward.1} parent=1 // pred_check_branch
      %55 = sbr.rel (0) target = $region21
    $region20: #{ae_forward.1} parent=1 // pred_region
      %56 = dma.done [#allocation3], 128
    $region21: #{ae_forward.1} parent=1 // pred_fallthru
      _
    // Predicated region
    $region22: #{ae_forward.1} parent=1 // pred_check
      _
    $region23: #{ae_forward.1} parent=1 // pred_check_branch
      %58 = sbr.rel (0) target = $region25
    $region24: #{ae_forward.1} parent=1 // pred_region
      %59 = dma.done [#allocation5], 128
    $region25: #{ae_forward.1} parent=1 // pred_fallthru
      _
    // Predicated region
    $region26: #{ae_forward.1} parent=1 // pred_check
      _
    $region27: #{ae_forward.1} parent=1 // pred_check_branch
      %61 = sbr.rel (0) target = $region29
    $region28: #{ae_forward.1} parent=1 // pred_region
      %62 = dma.done [#allocation5], 24576
    $region29: #{ae_forward.1} parent=1 // pred_fallthru
      _
    // Predicated region
    $region30: #{ae_forward.1} parent=1 // pred_check
      _
    $region31: #{ae_forward.1} parent=1 // pred_check_branch
      %64 = sbr.rel (0) target = $region33
    $region32: #{ae_forward.1} parent=1 // pred_region
      %65 = dma.done [#allocation8], 256
    $region33: #{ae_forward.1} parent=1 // pred_fallthru
      _
    %v67 = vld [vmem:[#allocation2] sm:$0xff]
    %v68 = vpack.c.bf16 %v67, %v67
    %v69 = vld [vmem:[#allocation4] sm:$0xff]
    %v70 = vpack.c.bf16 %v69, %v69
    %v71 = vld [vmem:[#allocation6] sm:$0xff]
    %v72 = vld [vmem:[#allocation6 + $0x8] sm:$0xff]
    %v73 = vld [vmem:[#allocation6 + $0x10] sm:$0xff]
    %v74 = vld [vmem:[#allocation6 + $0x18] sm:$0xff]
    %v75 = vld [vmem:[#allocation6 + $0x20] sm:$0xff]
    %v76 = vld [vmem:[#allocation6 + $0x28] sm:$0xff]
    %v77 = vld [vmem:[#allocation6 + $0x30] sm:$0xff]
    %v78 = vld [vmem:[#allocation6 + $0x38] sm:$0xff]
    %v83 = vunpack.c.l.b16 %v75
    %v84 = vunpack.c.h.b16 %v75
    %v85 = vunpack.c.l.b16 %v76
    %v86 = vunpack.c.h.b16 %v76
    %v87 = vunpack.c.l.b16 %v77
    %v88 = vunpack.c.h.b16 %v77
    %v89 = vunpack.c.l.b16 %v78
    %v90 = vunpack.c.h.b16 %v78
    %v91 = vpack.c.b16 %v85, %v83
    %v92 = vpack.c.b16 %v86, %v84
    %v93 = vpack.c.b16 %v89, %v87
    %v94 = vpack.c.b16 %v90, %v88
    %vm99 = vcmask 261120
    %v101 = vsel %vm99, %v70, 0
    %103 = vmatprep.subr.bf16.mxu0 0
    %104 = vmatpush1.bf16.msra.mxu0 0
    %105 = vmatprep.subr.bf16.mxu0 0
    %106 = vmatpush1.bf16.msra.mxu0 0
    %107 = vmatprep.subr.bf16.mxu0 0
    %108 = vmatpush1.bf16.msra.mxu0 0
    %109 = vmatprep.subr.bf16.mxu0 0
    %110 = vmatpush1.bf16.msra.mxu0 0
    %111 = vmatprep.subr.bf16.mxu0 0
    %112 = vmatpush1.bf16.msra.mxu0 0
    %113 = vmatprep.subr.bf16.mxu0 0
    %114 = vmatpush1.bf16.msra.mxu0 0
    %115 = vmatprep.subr.bf16.mxu0 %v94
    %116 = vmatpush1.bf16.msra.mxu0 %v93
    %117 = vmatprep.subr.bf16.mxu0 %v92
    %118 = vmatpush1.bf16.msra.mxu0 %v91
    %119 = vmatprep.subr.bf16.mxu0 0
    %120 = vmatpush2.bf16.msra.mxu0 0
    %121 = vmatprep.subr.bf16.mxu0 0
    %122 = vmatpush2.bf16.msra.mxu0 0
    %123 = vmatprep.subr.bf16.mxu0 0
    %124 = vmatpush2.bf16.msra.mxu0 0
    %125 = vmatprep.subr.bf16.mxu0 0
    %126 = vmatpush2.bf16.msra.mxu0 0
    %127 = vmatprep.subr.bf16.mxu0 0
    %128 = vmatpush2.bf16.msra.mxu0 0
    %129 = vmatprep.subr.bf16.mxu0 0
    %130 = vmatpush2.bf16.msra.mxu0 0
    %131 = vmatprep.subr.bf16.mxu0 0
    %132 = vmatpush2.bf16.msra.mxu0 0
    %133 = vmatprep.subr.bf16.mxu0 0
    %134 = vmatpush2.bf16.msra.mxu0 0
    %135 = vmatprep.mubr.bf16.mxu0 0
    %136 = vmatmul.mubr.bf16.gmra.mxu0 %v101
    %v137 = vpop.f32.mrf.mxu0
    %v138 = vadd.f32 0.0, %v137
    %v139 = vpop.f32.mrf.mxu0
    %v140 = vadd.f32 0.0, %v139
    %v141 = vpop.f32.mrf.mxu0
    %v142 = vpop.f32.mrf.mxu0
    %143 = vdwg.mxu0
    %v148 = vunpack.c.l.b16 %v71
    %v149 = vunpack.c.h.b16 %v71
    %v150 = vunpack.c.l.b16 %v72
    %v151 = vunpack.c.h.b16 %v72
    %v152 = vunpack.c.l.b16 %v73
    %v153 = vunpack.c.h.b16 %v73
    %v154 = vunpack.c.l.b16 %v74
    %v155 = vunpack.c.h.b16 %v74
    %v156 = vpack.c.b16 %v150, %v148
    %v157 = vpack.c.b16 %v151, %v149
    %v158 = vpack.c.b16 %v154, %v152
    %v159 = vpack.c.b16 %v155, %v153
    %v165 = vsel %vm99, %v68, 0
    %167 = vmatprep.subr.bf16.mxu0 0
    %168 = vmatpush1.bf16.msra.mxu0 0
    %169 = vmatprep.subr.bf16.mxu0 0
    %170 = vmatpush1.bf16.msra.mxu0 0
    %171 = vmatprep.subr.bf16.mxu0 0
    %172 = vmatpush1.bf16.msra.mxu0 0
    %173 = vmatprep.subr.bf16.mxu0 0
    %174 = vmatpush1.bf16.msra.mxu0 0
    %175 = vmatprep.subr.bf16.mxu0 0
    %176 = vmatpush1.bf16.msra.mxu0 0
    %177 = vmatprep.subr.bf16.mxu0 0
    %178 = vmatpush1.bf16.msra.mxu0 0
    %179 = vmatprep.subr.bf16.mxu0 %v159
    %180 = vmatpush1.bf16.msra.mxu0 %v158
    %181 = vmatprep.subr.bf16.mxu0 %v157
    %182 = vmatpush1.bf16.msra.mxu0 %v156
    %183 = vmatprep.subr.bf16.mxu0 0
    %184 = vmatpush2.bf16.msra.mxu0 0
    %185 = vmatprep.subr.bf16.mxu0 0
    %186 = vmatpush2.bf16.msra.mxu0 0
    %187 = vmatprep.subr.bf16.mxu0 0
    %188 = vmatpush2.bf16.msra.mxu0 0
    %189 = vmatprep.subr.bf16.mxu0 0
    %190 = vmatpush2.bf16.msra.mxu0 0
    %191 = vmatprep.subr.bf16.mxu0 0
    %192 = vmatpush2.bf16.msra.mxu0 0
    %193 = vmatprep.subr.bf16.mxu0 0
    %194 = vmatpush2.bf16.msra.mxu0 0
    %195 = vmatprep.subr.bf16.mxu0 0
    %196 = vmatpush2.bf16.msra.mxu0 0
    %197 = vmatprep.subr.bf16.mxu0 0
    %198 = vmatpush2.bf16.msra.mxu0 0
    %199 = vmatprep.mubr.bf16.mxu0 0
    %200 = vmatmul.mubr.bf16.gmra.mxu0 %v165
    %v201 = vpop.f32.mrf.mxu0
    %v202 = vadd.f32 %v138, %v201
    %v203 = vpop.f32.mrf.mxu0
    %v204 = vadd.f32 %v140, %v203
    %v205 = vpop.f32.mrf.mxu0
    %v206 = vpop.f32.mrf.mxu0
    %207 = vdwg.mxu0
    %v208 = vld [vmem:[#allocation7] ss:$8 sm:$0x3]
    %v210 = vlaneseq
    %v211 = vshrl.u32 %v210, 7
    %v212 = vsub.s32 0, %v211
    %v213 = vrot.slane %v208, %v212
    %v214 = vlaneseq
    %v215 = vshrl.u32 %v214, 7
    %v216 = vsub.s32 1, %v215
    %v217 = vrot.slane %v208, %v216
    %v220 = vadd.f32 %v202, %v213
    %v221 = vadd.f32 %v204, %v217
    %vm222 = vcmp.ge.f32.partialorder %v220, 0.0
    %vm223 = vcmp.ge.f32.partialorder %v221, 0.0
    %v224 = vmul.f32 %v220, 0.1
    %v225 = vmul.f32 %v221, 0.1
    %v226 = vsel %vm222, %v220, %v224
    %v227 = vsel %vm223, %v221, %v225
    %v228 = vpack.c.bf16 %v226, %v226
    %v229 = vpack.c.bf16 %v227, %v227
    %s230 = scalar_lea.vmem [#allocation6], 256
    %v231 = vld [vmem:[%s230] sm:$0xff]
    %v232 = vld [vmem:[%s230 + $0x8] sm:$0xff]
    %v233 = vld [vmem:[%s230 + $0x10] sm:$0xff]
    %v234 = vld [vmem:[%s230 + $0x18] sm:$0xff]
    %v235 = vld [vmem:[%s230 + $0x20] sm:$0xff]
    %v236 = vld [vmem:[%s230 + $0x28] sm:$0xff]
    %v237 = vld [vmem:[%s230 + $0x30] sm:$0xff]
    %v238 = vld [vmem:[%s230 + $0x38] sm:$0xff]
    %v239 = vld [vmem:[%s230 + $0x40] sm:$0xff]
    %v240 = vld [vmem:[%s230 + $0x48] sm:$0xff]
    %v241 = vld [vmem:[%s230 + $0x50] sm:$0xff]
    %v242 = vld [vmem:[%s230 + $0x58] sm:$0xff]
    %v243 = vld [vmem:[%s230 + $0x60] sm:$0xff]
    %v244 = vld [vmem:[%s230 + $0x68] sm:$0xff]
    %v245 = vld [vmem:[%s230 + $0x70] sm:$0xff]
    %v246 = vld [vmem:[%s230 + $0x78] sm:$0xff]
    %v247 = vld [vmem:[%s230 + $0x80] sm:$0xff]
    %v248 = vld [vmem:[%s230 + $0x88] sm:$0xff]
    %v249 = vld [vmem:[%s230 + $0x90] sm:$0xff]
    %v250 = vld [vmem:[%s230 + $0x98] sm:$0xff]
    %v251 = vld [vmem:[%s230 + $0xa0] sm:$0xff]
    %v252 = vld [vmem:[%s230 + $0xa8] sm:$0xff]
    %v253 = vld [vmem:[%s230 + $0xb0] sm:$0xff]
    %v254 = vld [vmem:[%s230 + $0xb8] sm:$0xff]
    %v255 = vld [vmem:[%s230 + $0xc0] sm:$0xff]
    %v256 = vld [vmem:[%s230 + $0xc8] sm:$0xff]
    %v257 = vld [vmem:[%s230 + $0xd0] sm:$0xff]
    %v258 = vld [vmem:[%s230 + $0xd8] sm:$0xff]
    %v259 = vld [vmem:[%s230 + $0xe0] sm:$0xff]
    %v260 = vld [vmem:[%s230 + $0xe8] sm:$0xff]
    %v261 = vld [vmem:[%s230 + $0xf0] sm:$0xff]
    %v262 = vld [vmem:[%s230 + $0xf8] sm:$0xff]
    %s263 = scalar_lea.vmem [#allocation7], 1
    %v264 = vld [vmem:[%s263] ss:$8 sm:$0x3]
    %v266 = vlaneseq
    %v267 = vshrl.u32 %v266, 7
    %v268 = vsub.s32 0, %v267
    %v269 = vrot.slane %v264, %v268
    %v270 = vlaneseq
    %v271 = vshrl.u32 %v270, 7
    %v272 = vsub.s32 1, %v271
    %v273 = vrot.slane %v264, %v272
    %v308 = vunpack.c.l.b16 %v231
    %v309 = vunpack.c.h.b16 %v231
    %v310 = vunpack.c.l.b16 %v232
    %v311 = vunpack.c.h.b16 %v232
    %v312 = vunpack.c.l.b16 %v233
    %v313 = vunpack.c.h.b16 %v233
    %v314 = vunpack.c.l.b16 %v234
    %v315 = vunpack.c.h.b16 %v234
    %v316 = vunpack.c.l.b16 %v235
    %v317 = vunpack.c.h.b16 %v235
    %v318 = vunpack.c.l.b16 %v236
    %v319 = vunpack.c.h.b16 %v236
    %v320 = vunpack.c.l.b16 %v237
    %v321 = vunpack.c.h.b16 %v237
    %v322 = vunpack.c.l.b16 %v238
    %v323 = vunpack.c.h.b16 %v238
    %v324 = vunpack.c.l.b16 %v239
    %v325 = vunpack.c.h.b16 %v239
    %v326 = vunpack.c.l.b16 %v240
    %v327 = vunpack.c.h.b16 %v240
    %v328 = vunpack.c.l.b16 %v241
    %v329 = vunpack.c.h.b16 %v241
    %v330 = vunpack.c.l.b16 %v242
    %v331 = vunpack.c.h.b16 %v242
    %v332 = vunpack.c.l.b16 %v243
    %v333 = vunpack.c.h.b16 %v243
    %v334 = vunpack.c.l.b16 %v244
    %v335 = vunpack.c.h.b16 %v244
    %v336 = vunpack.c.l.b16 %v245
    %v337 = vunpack.c.h.b16 %v245
    %v338 = vunpack.c.l.b16 %v246
    %v339 = vunpack.c.h.b16 %v246
    %v340 = vunpack.c.l.b16 %v247
    %v341 = vunpack.c.h.b16 %v247
    %v342 = vunpack.c.l.b16 %v248
    %v343 = vunpack.c.h.b16 %v248
    %v344 = vunpack.c.l.b16 %v249
    %v345 = vunpack.c.h.b16 %v249
    %v346 = vunpack.c.l.b16 %v250
    %v347 = vunpack.c.h.b16 %v250
    %v348 = vunpack.c.l.b16 %v251
    %v349 = vunpack.c.h.b16 %v251
    %v350 = vunpack.c.l.b16 %v252
    %v351 = vunpack.c.h.b16 %v252
    %v352 = vunpack.c.l.b16 %v253
    %v353 = vunpack.c.h.b16 %v253
    %v354 = vunpack.c.l.b16 %v254
    %v355 = vunpack.c.h.b16 %v254
    %v356 = vunpack.c.l.b16 %v255
    %v357 = vunpack.c.h.b16 %v255
    %v358 = vunpack.c.l.b16 %v256
    %v359 = vunpack.c.h.b16 %v256
    %v360 = vunpack.c.l.b16 %v257
    %v361 = vunpack.c.h.b16 %v257
    %v362 = vunpack.c.l.b16 %v258
    %v363 = vunpack.c.h.b16 %v258
    %v364 = vunpack.c.l.b16 %v259
    %v365 = vunpack.c.h.b16 %v259
    %v366 = vunpack.c.l.b16 %v260
    %v367 = vunpack.c.h.b16 %v260
    %v368 = vunpack.c.l.b16 %v261
    %v369 = vunpack.c.h.b16 %v261
    %v370 = vunpack.c.l.b16 %v262
    %v371 = vunpack.c.h.b16 %v262
    %v372 = vpack.c.b16 %v310, %v308
    %v373 = vpack.c.b16 %v311, %v309
    %v374 = vpack.c.b16 %v314, %v312
    %v375 = vpack.c.b16 %v315, %v313
    %v376 = vpack.c.b16 %v318, %v316
    %v377 = vpack.c.b16 %v319, %v317
    %v378 = vpack.c.b16 %v322, %v320
    %v379 = vpack.c.b16 %v323, %v321
    %v380 = vpack.c.b16 %v326, %v324
    %v381 = vpack.c.b16 %v327, %v325
    %v382 = vpack.c.b16 %v330, %v328
    %v383 = vpack.c.b16 %v331, %v329
    %v384 = vpack.c.b16 %v334, %v332
    %v385 = vpack.c.b16 %v335, %v333
    %v386 = vpack.c.b16 %v338, %v336
    %v387 = vpack.c.b16 %v339, %v337
    %v388 = vpack.c.b16 %v342, %v340
    %v389 = vpack.c.b16 %v343, %v341
    %v390 = vpack.c.b16 %v346, %v344
    %v391 = vpack.c.b16 %v347, %v345
    %v392 = vpack.c.b16 %v350, %v348
    %v393 = vpack.c.b16 %v351, %v349
    %v394 = vpack.c.b16 %v354, %v352
    %v395 = vpack.c.b16 %v355, %v353
    %v396 = vpack.c.b16 %v358, %v356
    %v397 = vpack.c.b16 %v359, %v357
    %v398 = vpack.c.b16 %v362, %v360
    %v399 = vpack.c.b16 %v363, %v361
    %v400 = vpack.c.b16 %v366, %v364
    %v401 = vpack.c.b16 %v367, %v365
    %v402 = vpack.c.b16 %v370, %v368
    %v403 = vpack.c.b16 %v371, %v369
    %436 = vmatprep.subr.bf16.mxu0 %v387
    %437 = vmatpush1.bf16.msra.mxu0 %v386
    %438 = vmatprep.subr.bf16.mxu0 %v385
    %439 = vmatpush1.bf16.msra.mxu0 %v384
    %440 = vmatprep.subr.bf16.mxu0 %v383
    %441 = vmatpush1.bf16.msra.mxu0 %v382
    %442 = vmatprep.subr.bf16.mxu0 %v381
    %443 = vmatpush1.bf16.msra.mxu0 %v380
    %444 = vmatprep.subr.bf16.mxu0 %v379
    %445 = vmatpush1.bf16.msra.mxu0 %v378
    %446 = vmatprep.subr.bf16.mxu0 %v377
    %447 = vmatpush1.bf16.msra.mxu0 %v376
    %448 = vmatprep.subr.bf16.mxu0 %v375
    %449 = vmatpush1.bf16.msra.mxu0 %v374
    %450 = vmatprep.subr.bf16.mxu0 %v373
    %451 = vmatpush1.bf16.msra.mxu0 %v372
    %452 = vmatprep.subr.bf16.mxu0 %v403
    %453 = vmatpush2.bf16.msra.mxu0 %v402
    %454 = vmatprep.subr.bf16.mxu0 %v401
    %455 = vmatpush2.bf16.msra.mxu0 %v400
    %456 = vmatprep.subr.bf16.mxu0 %v399
    %457 = vmatpush2.bf16.msra.mxu0 %v398
    %458 = vmatprep.subr.bf16.mxu0 %v397
    %459 = vmatpush2.bf16.msra.mxu0 %v396
    %460 = vmatprep.subr.bf16.mxu0 %v395
    %461 = vmatpush2.bf16.msra.mxu0 %v394
    %462 = vmatprep.subr.bf16.mxu0 %v393
    %463 = vmatpush2.bf16.msra.mxu0 %v392
    %464 = vmatprep.subr.bf16.mxu0 %v391
    %465 = vmatpush2.bf16.msra.mxu0 %v390
    %466 = vmatprep.subr.bf16.mxu0 %v389
    %467 = vmatpush2.bf16.msra.mxu0 %v388
    %468 = vmatprep.mubr.bf16.mxu0 %v229
    %469 = vmatmul.mubr.bf16.gmra.mxu0 %v228
    %v470 = vpop.f32.mrf.mxu0
    %v471 = vadd.f32 %v269, %v470
    %v472 = vpop.f32.mrf.mxu0
    %v473 = vadd.f32 %v273, %v472
    %v474 = vpop.f32.mrf.mxu0
    %v475 = vpop.f32.mrf.mxu0
    %476 = vdwg.mxu0
    %vm477 = vcmp.ge.f32.partialorder %v471, 0.0
    %vm478 = vcmp.ge.f32.partialorder %v473, 0.0
    %v479 = vmul.f32 %v471, 0.1
    %v480 = vmul.f32 %v473, 0.1
    %v481 = vsel %vm477, %v471, %v479
    %v482 = vsel %vm478, %v473, %v480
    %v483 = vpack.c.bf16 %v481, %v481
    %v484 = vpack.c.bf16 %v482, %v482
    %s485 = scalar_lea.vmem [#allocation6], 512
    %v486 = vld [vmem:[%s485] sm:$0xff]
    %v487 = vld [vmem:[%s485 + $0x8] sm:$0xff]
    %v488 = vld [vmem:[%s485 + $0x10] sm:$0xff]
    %v489 = vld [vmem:[%s485 + $0x18] sm:$0xff]
    %v490 = vld [vmem:[%s485 + $0x20] sm:$0xff]
    %v491 = vld [vmem:[%s485 + $0x28] sm:$0xff]
    %v492 = vld [vmem:[%s485 + $0x30] sm:$0xff]
    %v493 = vld [vmem:[%s485 + $0x38] sm:$0xff]
    %v494 = vld [vmem:[%s485 + $0x40] sm:$0xff]
    %v495 = vld [vmem:[%s485 + $0x48] sm:$0xff]
    %v496 = vld [vmem:[%s485 + $0x50] sm:$0xff]
    %v497 = vld [vmem:[%s485 + $0x58] sm:$0xff]
    %v498 = vld [vmem:[%s485 + $0x60] sm:$0xff]
    %v499 = vld [vmem:[%s485 + $0x68] sm:$0xff]
    %v500 = vld [vmem:[%s485 + $0x70] sm:$0xff]
    %v501 = vld [vmem:[%s485 + $0x78] sm:$0xff]
    %v502 = vld [vmem:[%s485 + $0x80] sm:$0xff]
    %v503 = vld [vmem:[%s485 + $0x88] sm:$0xff]
    %v504 = vld [vmem:[%s485 + $0x90] sm:$0xff]
    %v505 = vld [vmem:[%s485 + $0x98] sm:$0xff]
    %v506 = vld [vmem:[%s485 + $0xa0] sm:$0xff]
    %v507 = vld [vmem:[%s485 + $0xa8] sm:$0xff]
    %v508 = vld [vmem:[%s485 + $0xb0] sm:$0xff]
    %v509 = vld [vmem:[%s485 + $0xb8] sm:$0xff]
    %v510 = vld [vmem:[%s485 + $0xc0] sm:$0xff]
    %v511 = vld [vmem:[%s485 + $0xc8] sm:$0xff]
    %v512 = vld [vmem:[%s485 + $0xd0] sm:$0xff]
    %v513 = vld [vmem:[%s485 + $0xd8] sm:$0xff]
    %v514 = vld [vmem:[%s485 + $0xe0] sm:$0xff]
    %v515 = vld [vmem:[%s485 + $0xe8] sm:$0xff]
    %v516 = vld [vmem:[%s485 + $0xf0] sm:$0xff]
    %v517 = vld [vmem:[%s485 + $0xf8] sm:$0xff]
    %s518 = scalar_lea.vmem [#allocation7], 2
    %v519 = vld [vmem:[%s518] ss:$8 sm:$0x3]
    %v521 = vlaneseq
    %v522 = vshrl.u32 %v521, 7
    %v523 = vsub.s32 0, %v522
    %v524 = vrot.slane %v519, %v523
    %v525 = vlaneseq
    %v526 = vshrl.u32 %v525, 7
    %v527 = vsub.s32 1, %v526
    %v528 = vrot.slane %v519, %v527
    %v563 = vunpack.c.l.b16 %v486
    %v564 = vunpack.c.h.b16 %v486
    %v565 = vunpack.c.l.b16 %v487
    %v566 = vunpack.c.h.b16 %v487
    %v567 = vunpack.c.l.b16 %v488
    %v568 = vunpack.c.h.b16 %v488
    %v569 = vunpack.c.l.b16 %v489
    %v570 = vunpack.c.h.b16 %v489
    %v571 = vunpack.c.l.b16 %v490
    %v572 = vunpack.c.h.b16 %v490
    %v573 = vunpack.c.l.b16 %v491
    %v574 = vunpack.c.h.b16 %v491
    %v575 = vunpack.c.l.b16 %v492
    %v576 = vunpack.c.h.b16 %v492
    %v577 = vunpack.c.l.b16 %v493
    %v578 = vunpack.c.h.b16 %v493
    %v579 = vunpack.c.l.b16 %v494
    %v580 = vunpack.c.h.b16 %v494
    %v581 = vunpack.c.l.b16 %v495
    %v582 = vunpack.c.h.b16 %v495
    %v583 = vunpack.c.l.b16 %v496
    %v584 = vunpack.c.h.b16 %v496
    %v585 = vunpack.c.l.b16 %v497
    %v586 = vunpack.c.h.b16 %v497
    %v587 = vunpack.c.l.b16 %v498
    %v588 = vunpack.c.h.b16 %v498
    %v589 = vunpack.c.l.b16 %v499
    %v590 = vunpack.c.h.b16 %v499
    %v591 = vunpack.c.l.b16 %v500
    %v592 = vunpack.c.h.b16 %v500
    %v593 = vunpack.c.l.b16 %v501
    %v594 = vunpack.c.h.b16 %v501
    %v595 = vunpack.c.l.b16 %v502
    %v596 = vunpack.c.h.b16 %v502
    %v597 = vunpack.c.l.b16 %v503
    %v598 = vunpack.c.h.b16 %v503
    %v599 = vunpack.c.l.b16 %v504
    %v600 = vunpack.c.h.b16 %v504
    %v601 = vunpack.c.l.b16 %v505
    %v602 = vunpack.c.h.b16 %v505
    %v603 = vunpack.c.l.b16 %v506
    %v604 = vunpack.c.h.b16 %v506
    %v605 = vunpack.c.l.b16 %v507
    %v606 = vunpack.c.h.b16 %v507
    %v607 = vunpack.c.l.b16 %v508
    %v608 = vunpack.c.h.b16 %v508
    %v609 = vunpack.c.l.b16 %v509
    %v610 = vunpack.c.h.b16 %v509
    %v611 = vunpack.c.l.b16 %v510
    %v612 = vunpack.c.h.b16 %v510
    %v613 = vunpack.c.l.b16 %v511
    %v614 = vunpack.c.h.b16 %v511
    %v615 = vunpack.c.l.b16 %v512
    %v616 = vunpack.c.h.b16 %v512
    %v617 = vunpack.c.l.b16 %v513
    %v618 = vunpack.c.h.b16 %v513
    %v619 = vunpack.c.l.b16 %v514
    %v620 = vunpack.c.h.b16 %v514
    %v621 = vunpack.c.l.b16 %v515
    %v622 = vunpack.c.h.b16 %v515
    %v623 = vunpack.c.l.b16 %v516
    %v624 = vunpack.c.h.b16 %v516
    %v625 = vunpack.c.l.b16 %v517
    %v626 = vunpack.c.h.b16 %v517
    %v627 = vpack.c.b16 %v565, %v563
    %v628 = vpack.c.b16 %v566, %v564
    %v629 = vpack.c.b16 %v569, %v567
    %v630 = vpack.c.b16 %v570, %v568
    %v631 = vpack.c.b16 %v573, %v571
    %v632 = vpack.c.b16 %v574, %v572
    %v633 = vpack.c.b16 %v577, %v575
    %v634 = vpack.c.b16 %v578, %v576
    %v635 = vpack.c.b16 %v581, %v579
    %v636 = vpack.c.b16 %v582, %v580
    %v637 = vpack.c.b16 %v585, %v583
    %v638 = vpack.c.b16 %v586, %v584
    %v639 = vpack.c.b16 %v589, %v587
    %v640 = vpack.c.b16 %v590, %v588
    %v641 = vpack.c.b16 %v593, %v591
    %v642 = vpack.c.b16 %v594, %v592
    %v643 = vpack.c.b16 %v597, %v595
    %v644 = vpack.c.b16 %v598, %v596
    %v645 = vpack.c.b16 %v601, %v599
    %v646 = vpack.c.b16 %v602, %v600
    %v647 = vpack.c.b16 %v605, %v603
    %v648 = vpack.c.b16 %v606, %v604
    %v649 = vpack.c.b16 %v609, %v607
    %v650 = vpack.c.b16 %v610, %v608
    %v651 = vpack.c.b16 %v613, %v611
    %v652 = vpack.c.b16 %v614, %v612
    %v653 = vpack.c.b16 %v617, %v615
    %v654 = vpack.c.b16 %v618, %v616
    %v655 = vpack.c.b16 %v621, %v619
    %v656 = vpack.c.b16 %v622, %v620
    %v657 = vpack.c.b16 %v625, %v623
    %v658 = vpack.c.b16 %v626, %v624
    %691 = vmatprep.subr.bf16.mxu0 %v642
    %692 = vmatpush1.bf16.msra.mxu0 %v641
    %693 = vmatprep.subr.bf16.mxu0 %v640
    %694 = vmatpush1.bf16.msra.mxu0 %v639
    %695 = vmatprep.subr.bf16.mxu0 %v638
    %696 = vmatpush1.bf16.msra.mxu0 %v637
    %697 = vmatprep.subr.bf16.mxu0 %v636
    %698 = vmatpush1.bf16.msra.mxu0 %v635
    %699 = vmatprep.subr.bf16.mxu0 %v634
    %700 = vmatpush1.bf16.msra.mxu0 %v633
    %701 = vmatprep.subr.bf16.mxu0 %v632
    %702 = vmatpush1.bf16.msra.mxu0 %v631
    %703 = vmatprep.subr.bf16.mxu0 %v630
    %704 = vmatpush1.bf16.msra.mxu0 %v629
    %705 = vmatprep.subr.bf16.mxu0 %v628
    %706 = vmatpush1.bf16.msra.mxu0 %v627
    %707 = vmatprep.subr.bf16.mxu0 %v658
    %708 = vmatpush2.bf16.msra.mxu0 %v657
    %709 = vmatprep.subr.bf16.mxu0 %v656
    %710 = vmatpush2.bf16.msra.mxu0 %v655
    %711 = vmatprep.subr.bf16.mxu0 %v654
    %712 = vmatpush2.bf16.msra.mxu0 %v653
    %713 = vmatprep.subr.bf16.mxu0 %v652
    %714 = vmatpush2.bf16.msra.mxu0 %v651
    %715 = vmatprep.subr.bf16.mxu0 %v650
    %716 = vmatpush2.bf16.msra.mxu0 %v649
    %717 = vmatprep.subr.bf16.mxu0 %v648
    %718 = vmatpush2.bf16.msra.mxu0 %v647
    %719 = vmatprep.subr.bf16.mxu0 %v646
    %720 = vmatpush2.bf16.msra.mxu0 %v645
    %721 = vmatprep.subr.bf16.mxu0 %v644
    %722 = vmatpush2.bf16.msra.mxu0 %v643
    %723 = vmatprep.mubr.bf16.mxu0 %v484
    %724 = vmatmul.mubr.bf16.gmra.mxu0 %v483
    %v725 = vpop.f32.mrf.mxu0
    %v726 = vadd.f32 %v524, %v725
    %v727 = vpop.f32.mrf.mxu0
    %v728 = vadd.f32 %v528, %v727
    %v729 = vpop.f32.mrf.mxu0
    %v730 = vpop.f32.mrf.mxu0
    %731 = vdwg.mxu0
    %vm732 = vcmp.ge.f32.partialorder %v726, 0.0
    %vm733 = vcmp.ge.f32.partialorder %v728, 0.0
    %v734 = vmul.f32 %v726, 0.1
    %v735 = vmul.f32 %v728, 0.1
    %v736 = vsel %vm732, %v726, %v734
    %v737 = vsel %vm733, %v728, %v735
    %v738 = vpack.c.bf16 %v736, %v736
    %v739 = vpack.c.bf16 %v737, %v737
    %s740 = scalar_lea.vmem [#allocation6], 768
    %v741 = vld [vmem:[%s740] sm:$0xff]
    %v742 = vld [vmem:[%s740 + $0x8] sm:$0xff]
    %v743 = vld [vmem:[%s740 + $0x10] sm:$0xff]
    %v744 = vld [vmem:[%s740 + $0x18] sm:$0xff]
    %v745 = vld [vmem:[%s740 + $0x20] sm:$0xff]
    %v746 = vld [vmem:[%s740 + $0x28] sm:$0xff]
    %v747 = vld [vmem:[%s740 + $0x30] sm:$0xff]
    %v748 = vld [vmem:[%s740 + $0x38] sm:$0xff]
    %v749 = vld [vmem:[%s740 + $0x40] sm:$0xff]
    %v750 = vld [vmem:[%s740 + $0x48] sm:$0xff]
    %v751 = vld [vmem:[%s740 + $0x50] sm:$0xff]
    %v752 = vld [vmem:[%s740 + $0x58] sm:$0xff]
    %v753 = vld [vmem:[%s740 + $0x60] sm:$0xff]
    %v754 = vld [vmem:[%s740 + $0x68] sm:$0xff]
    %v755 = vld [vmem:[%s740 + $0x70] sm:$0xff]
    %v756 = vld [vmem:[%s740 + $0x78] sm:$0xff]
    %v757 = vld [vmem:[%s740 + $0x80] sm:$0xff]
    %v758 = vld [vmem:[%s740 + $0x88] sm:$0xff]
    %v759 = vld [vmem:[%s740 + $0x90] sm:$0xff]
    %v760 = vld [vmem:[%s740 + $0x98] sm:$0xff]
    %v761 = vld [vmem:[%s740 + $0xa0] sm:$0xff]
    %v762 = vld [vmem:[%s740 + $0xa8] sm:$0xff]
    %v763 = vld [vmem:[%s740 + $0xb0] sm:$0xff]
    %v764 = vld [vmem:[%s740 + $0xb8] sm:$0xff]
    %v765 = vld [vmem:[%s740 + $0xc0] sm:$0xff]
    %v766 = vld [vmem:[%s740 + $0xc8] sm:$0xff]
    %v767 = vld [vmem:[%s740 + $0xd0] sm:$0xff]
    %v768 = vld [vmem:[%s740 + $0xd8] sm:$0xff]
    %v769 = vld [vmem:[%s740 + $0xe0] sm:$0xff]
    %v770 = vld [vmem:[%s740 + $0xe8] sm:$0xff]
    %v771 = vld [vmem:[%s740 + $0xf0] sm:$0xff]
    %v772 = vld [vmem:[%s740 + $0xf8] sm:$0xff]
    %s773 = scalar_lea.vmem [#allocation7], 3
    %v774 = vld [vmem:[%s773] ss:$8 sm:$0x3]
    %v776 = vlaneseq
    %v777 = vshrl.u32 %v776, 7
    %v778 = vsub.s32 0, %v777
    %v779 = vrot.slane %v774, %v778
    %v780 = vlaneseq
    %v781 = vshrl.u32 %v780, 7
    %v782 = vsub.s32 1, %v781
    %v783 = vrot.slane %v774, %v782
    %v818 = vunpack.c.l.b16 %v741
    %v819 = vunpack.c.h.b16 %v741
    %v820 = vunpack.c.l.b16 %v742
    %v821 = vunpack.c.h.b16 %v742
    %v822 = vunpack.c.l.b16 %v743
    %v823 = vunpack.c.h.b16 %v743
    %v824 = vunpack.c.l.b16 %v744
    %v825 = vunpack.c.h.b16 %v744
    %v826 = vunpack.c.l.b16 %v745
    %v827 = vunpack.c.h.b16 %v745
    %v828 = vunpack.c.l.b16 %v746
    %v829 = vunpack.c.h.b16 %v746
    %v830 = vunpack.c.l.b16 %v747
    %v831 = vunpack.c.h.b16 %v747
    %v832 = vunpack.c.l.b16 %v748
    %v833 = vunpack.c.h.b16 %v748
    %v834 = vunpack.c.l.b16 %v749
    %v835 = vunpack.c.h.b16 %v749
    %v836 = vunpack.c.l.b16 %v750
    %v837 = vunpack.c.h.b16 %v750
    %v838 = vunpack.c.l.b16 %v751
    %v839 = vunpack.c.h.b16 %v751
    %v840 = vunpack.c.l.b16 %v752
    %v841 = vunpack.c.h.b16 %v752
    %v842 = vunpack.c.l.b16 %v753
    %v843 = vunpack.c.h.b16 %v753
    %v844 = vunpack.c.l.b16 %v754
    %v845 = vunpack.c.h.b16 %v754
    %v846 = vunpack.c.l.b16 %v755
    %v847 = vunpack.c.h.b16 %v755
    %v848 = vunpack.c.l.b16 %v756
    %v849 = vunpack.c.h.b16 %v756
    %v850 = vunpack.c.l.b16 %v757
    %v851 = vunpack.c.h.b16 %v757
    %v852 = vunpack.c.l.b16 %v758
    %v853 = vunpack.c.h.b16 %v758
    %v854 = vunpack.c.l.b16 %v759
    %v855 = vunpack.c.h.b16 %v759
    %v856 = vunpack.c.l.b16 %v760
    %v857 = vunpack.c.h.b16 %v760
    %v858 = vunpack.c.l.b16 %v761
    %v859 = vunpack.c.h.b16 %v761
    %v860 = vunpack.c.l.b16 %v762
    %v861 = vunpack.c.h.b16 %v762
    %v862 = vunpack.c.l.b16 %v763
    %v863 = vunpack.c.h.b16 %v763
    %v864 = vunpack.c.l.b16 %v764
    %v865 = vunpack.c.h.b16 %v764
    %v866 = vunpack.c.l.b16 %v765
    %v867 = vunpack.c.h.b16 %v765
    %v868 = vunpack.c.l.b16 %v766
    %v869 = vunpack.c.h.b16 %v766
    %v870 = vunpack.c.l.b16 %v767
    %v871 = vunpack.c.h.b16 %v767
    %v872 = vunpack.c.l.b16 %v768
    %v873 = vunpack.c.h.b16 %v768
    %v874 = vunpack.c.l.b16 %v769
    %v875 = vunpack.c.h.b16 %v769
    %v876 = vunpack.c.l.b16 %v770
    %v877 = vunpack.c.h.b16 %v770
    %v878 = vunpack.c.l.b16 %v771
    %v879 = vunpack.c.h.b16 %v771
    %v880 = vunpack.c.l.b16 %v772
    %v881 = vunpack.c.h.b16 %v772
    %v882 = vpack.c.b16 %v820, %v818
    %v883 = vpack.c.b16 %v821, %v819
    %v884 = vpack.c.b16 %v824, %v822
    %v885 = vpack.c.b16 %v825, %v823
    %v886 = vpack.c.b16 %v828, %v826
    %v887 = vpack.c.b16 %v829, %v827
    %v888 = vpack.c.b16 %v832, %v830
    %v889 = vpack.c.b16 %v833, %v831
    %v890 = vpack.c.b16 %v836, %v834
    %v891 = vpack.c.b16 %v837, %v835
    %v892 = vpack.c.b16 %v840, %v838
    %v893 = vpack.c.b16 %v841, %v839
    %v894 = vpack.c.b16 %v844, %v842
    %v895 = vpack.c.b16 %v845, %v843
    %v896 = vpack.c.b16 %v848, %v846
    %v897 = vpack.c.b16 %v849, %v847
    %v898 = vpack.c.b16 %v852, %v850
    %v899 = vpack.c.b16 %v853, %v851
    %v900 = vpack.c.b16 %v856, %v854
    %v901 = vpack.c.b16 %v857, %v855
    %v902 = vpack.c.b16 %v860, %v858
    %v903 = vpack.c.b16 %v861, %v859
    %v904 = vpack.c.b16 %v864, %v862
    %v905 = vpack.c.b16 %v865, %v863
    %v906 = vpack.c.b16 %v868, %v866
    %v907 = vpack.c.b16 %v869, %v867
    %v908 = vpack.c.b16 %v872, %v870
    %v909 = vpack.c.b16 %v873, %v871
    %v910 = vpack.c.b16 %v876, %v874
    %v911 = vpack.c.b16 %v877, %v875
    %v912 = vpack.c.b16 %v880, %v878
    %v913 = vpack.c.b16 %v881, %v879
    %946 = vmatprep.subr.bf16.mxu0 %v897
    %947 = vmatpush1.bf16.msra.mxu0 %v896
    %948 = vmatprep.subr.bf16.mxu0 %v895
    %949 = vmatpush1.bf16.msra.mxu0 %v894
    %950 = vmatprep.subr.bf16.mxu0 %v893
    %951 = vmatpush1.bf16.msra.mxu0 %v892
    %952 = vmatprep.subr.bf16.mxu0 %v891
    %953 = vmatpush1.bf16.msra.mxu0 %v890
    %954 = vmatprep.subr.bf16.mxu0 %v889
    %955 = vmatpush1.bf16.msra.mxu0 %v888
    %956 = vmatprep.subr.bf16.mxu0 %v887
    %957 = vmatpush1.bf16.msra.mxu0 %v886
    %958 = vmatprep.subr.bf16.mxu0 %v885
    %959 = vmatpush1.bf16.msra.mxu0 %v884
    %960 = vmatprep.subr.bf16.mxu0 %v883
    %961 = vmatpush1.bf16.msra.mxu0 %v882
    %962 = vmatprep.subr.bf16.mxu0 %v913
    %963 = vmatpush2.bf16.msra.mxu0 %v912
    %964 = vmatprep.subr.bf16.mxu0 %v911
    %965 = vmatpush2.bf16.msra.mxu0 %v910
    %966 = vmatprep.subr.bf16.mxu0 %v909
    %967 = vmatpush2.bf16.msra.mxu0 %v908
    %968 = vmatprep.subr.bf16.mxu0 %v907
    %969 = vmatpush2.bf16.msra.mxu0 %v906
    %970 = vmatprep.subr.bf16.mxu0 %v905
    %971 = vmatpush2.bf16.msra.mxu0 %v904
    %972 = vmatprep.subr.bf16.mxu0 %v903
    %973 = vmatpush2.bf16.msra.mxu0 %v902
    %974 = vmatprep.subr.bf16.mxu0 %v901
    %975 = vmatpush2.bf16.msra.mxu0 %v900
    %976 = vmatprep.subr.bf16.mxu0 %v899
    %977 = vmatpush2.bf16.msra.mxu0 %v898
    %978 = vmatprep.mubr.bf16.mxu0 %v739
    %979 = vmatmul.mubr.bf16.gmra.mxu0 %v738
    %v980 = vpop.f32.mrf.mxu0
    %v981 = vadd.f32 %v779, %v980
    %v982 = vpop.f32.mrf.mxu0
    %v983 = vadd.f32 %v783, %v982
    %v984 = vpop.f32.mrf.mxu0
    %v985 = vpop.f32.mrf.mxu0
    %986 = vdwg.mxu0
    %vm987 = vcmp.ge.f32.partialorder %v981, 0.0
    %vm988 = vcmp.ge.f32.partialorder %v983, 0.0
    %v989 = vmul.f32 %v981, 0.1
    %v990 = vmul.f32 %v983, 0.1
    %v991 = vsel %vm987, %v981, %v989
    %v992 = vsel %vm988, %v983, %v990
    %v993 = vpack.c.bf16 %v991, %v991
    %v994 = vpack.c.bf16 %v992, %v992
    %s995 = scalar_lea.vmem [#allocation6], 1024
    %v996 = vld [vmem:[%s995] sm:$0xff]
    %v997 = vld [vmem:[%s995 + $0x8] sm:$0xff]
    %v998 = vld [vmem:[%s995 + $0x10] sm:$0xff]
    %v999 = vld [vmem:[%s995 + $0x18] sm:$0xff]
    %v1000 = vld [vmem:[%s995 + $0x20] sm:$0xff]
    %v1001 = vld [vmem:[%s995 + $0x28] sm:$0xff]
    %v1002 = vld [vmem:[%s995 + $0x30] sm:$0xff]
    %v1003 = vld [vmem:[%s995 + $0x38] sm:$0xff]
    %v1004 = vld [vmem:[%s995 + $0x40] sm:$0xff]
    %v1005 = vld [vmem:[%s995 + $0x48] sm:$0xff]
    %v1006 = vld [vmem:[%s995 + $0x50] sm:$0xff]
    %v1007 = vld [vmem:[%s995 + $0x58] sm:$0xff]
    %v1008 = vld [vmem:[%s995 + $0x60] sm:$0xff]
    %v1009 = vld [vmem:[%s995 + $0x68] sm:$0xff]
    %v1010 = vld [vmem:[%s995 + $0x70] sm:$0xff]
    %v1011 = vld [vmem:[%s995 + $0x78] sm:$0xff]
    %v1012 = vld [vmem:[%s995 + $0x80] sm:$0xff]
    %v1013 = vld [vmem:[%s995 + $0x88] sm:$0xff]
    %v1014 = vld [vmem:[%s995 + $0x90] sm:$0xff]
    %v1015 = vld [vmem:[%s995 + $0x98] sm:$0xff]
    %v1016 = vld [vmem:[%s995 + $0xa0] sm:$0xff]
    %v1017 = vld [vmem:[%s995 + $0xa8] sm:$0xff]
    %v1018 = vld [vmem:[%s995 + $0xb0] sm:$0xff]
    %v1019 = vld [vmem:[%s995 + $0xb8] sm:$0xff]
    %v1020 = vld [vmem:[%s995 + $0xc0] sm:$0xff]
    %v1021 = vld [vmem:[%s995 + $0xc8] sm:$0xff]
    %v1022 = vld [vmem:[%s995 + $0xd0] sm:$0xff]
    %v1023 = vld [vmem:[%s995 + $0xd8] sm:$0xff]
    %v1024 = vld [vmem:[%s995 + $0xe0] sm:$0xff]
    %v1025 = vld [vmem:[%s995 + $0xe8] sm:$0xff]
    %v1026 = vld [vmem:[%s995 + $0xf0] sm:$0xff]
    %v1027 = vld [vmem:[%s995 + $0xf8] sm:$0xff]
    %s1028 = scalar_lea.vmem [#allocation7], 4
    %v1029 = vld [vmem:[%s1028] ss:$8 sm:$0x3]
    %v1031 = vlaneseq
    %v1032 = vshrl.u32 %v1031, 7
    %v1033 = vsub.s32 0, %v1032
    %v1034 = vrot.slane %v1029, %v1033
    %v1035 = vlaneseq
    %v1036 = vshrl.u32 %v1035, 7
    %v1037 = vsub.s32 1, %v1036
    %v1038 = vrot.slane %v1029, %v1037
    %v1073 = vunpack.c.l.b16 %v996
    %v1074 = vunpack.c.h.b16 %v996
    %v1075 = vunpack.c.l.b16 %v997
    %v1076 = vunpack.c.h.b16 %v997
    %v1077 = vunpack.c.l.b16 %v998
    %v1078 = vunpack.c.h.b16 %v998
    %v1079 = vunpack.c.l.b16 %v999
    %v1080 = vunpack.c.h.b16 %v999
    %v1081 = vunpack.c.l.b16 %v1000
    %v1082 = vunpack.c.h.b16 %v1000
    %v1083 = vunpack.c.l.b16 %v1001
    %v1084 = vunpack.c.h.b16 %v1001
    %v1085 = vunpack.c.l.b16 %v1002
    %v1086 = vunpack.c.h.b16 %v1002
    %v1087 = vunpack.c.l.b16 %v1003
    %v1088 = vunpack.c.h.b16 %v1003
    %v1089 = vunpack.c.l.b16 %v1004
    %v1090 = vunpack.c.h.b16 %v1004
    %v1091 = vunpack.c.l.b16 %v1005
    %v1092 = vunpack.c.h.b16 %v1005
    %v1093 = vunpack.c.l.b16 %v1006
    %v1094 = vunpack.c.h.b16 %v1006
    %v1095 = vunpack.c.l.b16 %v1007
    %v1096 = vunpack.c.h.b16 %v1007
    %v1097 = vunpack.c.l.b16 %v1008
    %v1098 = vunpack.c.h.b16 %v1008
    %v1099 = vunpack.c.l.b16 %v1009
    %v1100 = vunpack.c.h.b16 %v1009
    %v1101 = vunpack.c.l.b16 %v1010
    %v1102 = vunpack.c.h.b16 %v1010
    %v1103 = vunpack.c.l.b16 %v1011
    %v1104 = vunpack.c.h.b16 %v1011
    %v1105 = vunpack.c.l.b16 %v1012
    %v1106 = vunpack.c.h.b16 %v1012
    %v1107 = vunpack.c.l.b16 %v1013
    %v1108 = vunpack.c.h.b16 %v1013
    %v1109 = vunpack.c.l.b16 %v1014
    %v1110 = vunpack.c.h.b16 %v1014
    %v1111 = vunpack.c.l.b16 %v1015
    %v1112 = vunpack.c.h.b16 %v1015
    %v1113 = vunpack.c.l.b16 %v1016
    %v1114 = vunpack.c.h.b16 %v1016
    %v1115 = vunpack.c.l.b16 %v1017
    %v1116 = vunpack.c.h.b16 %v1017
    %v1117 = vunpack.c.l.b16 %v1018
    %v1118 = vunpack.c.h.b16 %v1018
    %v1119 = vunpack.c.l.b16 %v1019
    %v1120 = vunpack.c.h.b16 %v1019
    %v1121 = vunpack.c.l.b16 %v1020
    %v1122 = vunpack.c.h.b16 %v1020
    %v1123 = vunpack.c.l.b16 %v1021
    %v1124 = vunpack.c.h.b16 %v1021
    %v1125 = vunpack.c.l.b16 %v1022
    %v1126 = vunpack.c.h.b16 %v1022
    %v1127 = vunpack.c.l.b16 %v1023
    %v1128 = vunpack.c.h.b16 %v1023
    %v1129 = vunpack.c.l.b16 %v1024
    %v1130 = vunpack.c.h.b16 %v1024
    %v1131 = vunpack.c.l.b16 %v1025
    %v1132 = vunpack.c.h.b16 %v1025
    %v1133 = vunpack.c.l.b16 %v1026
    %v1134 = vunpack.c.h.b16 %v1026
    %v1135 = vunpack.c.l.b16 %v1027
    %v1136 = vunpack.c.h.b16 %v1027
    %v1137 = vpack.c.b16 %v1075, %v1073
    %v1138 = vpack.c.b16 %v1076, %v1074
    %v1139 = vpack.c.b16 %v1079, %v1077
    %v1140 = vpack.c.b16 %v1080, %v1078
    %v1141 = vpack.c.b16 %v1083, %v1081
    %v1142 = vpack.c.b16 %v1084, %v1082
    %v1143 = vpack.c.b16 %v1087, %v1085
    %v1144 = vpack.c.b16 %v1088, %v1086
    %v1145 = vpack.c.b16 %v1091, %v1089
    %v1146 = vpack.c.b16 %v1092, %v1090
    %v1147 = vpack.c.b16 %v1095, %v1093
    %v1148 = vpack.c.b16 %v1096, %v1094
    %v1149 = vpack.c.b16 %v1099, %v1097
    %v1150 = vpack.c.b16 %v1100, %v1098
    %v1151 = vpack.c.b16 %v1103, %v1101
    %v1152 = vpack.c.b16 %v1104, %v1102
    %v1153 = vpack.c.b16 %v1107, %v1105
    %v1154 = vpack.c.b16 %v1108, %v1106
    %v1155 = vpack.c.b16 %v1111, %v1109
    %v1156 = vpack.c.b16 %v1112, %v1110
    %v1157 = vpack.c.b16 %v1115, %v1113
    %v1158 = vpack.c.b16 %v1116, %v1114
    %v1159 = vpack.c.b16 %v1119, %v1117
    %v1160 = vpack.c.b16 %v1120, %v1118
    %v1161 = vpack.c.b16 %v1123, %v1121
    %v1162 = vpack.c.b16 %v1124, %v1122
    %v1163 = vpack.c.b16 %v1127, %v1125
    %v1164 = vpack.c.b16 %v1128, %v1126
    %v1165 = vpack.c.b16 %v1131, %v1129
    %v1166 = vpack.c.b16 %v1132, %v1130
    %v1167 = vpack.c.b16 %v1135, %v1133
    %v1168 = vpack.c.b16 %v1136, %v1134
    %1201 = vmatprep.subr.bf16.mxu0 %v1152
    %1202 = vmatpush1.bf16.msra.mxu0 %v1151
    %1203 = vmatprep.subr.bf16.mxu0 %v1150
    %1204 = vmatpush1.bf16.msra.mxu0 %v1149
    %1205 = vmatprep.subr.bf16.mxu0 %v1148
    %1206 = vmatpush1.bf16.msra.mxu0 %v1147
    %1207 = vmatprep.subr.bf16.mxu0 %v1146
    %1208 = vmatpush1.bf16.msra.mxu0 %v1145
    %1209 = vmatprep.subr.bf16.mxu0 %v1144
    %1210 = vmatpush1.bf16.msra.mxu0 %v1143
    %1211 = vmatprep.subr.bf16.mxu0 %v1142
    %1212 = vmatpush1.bf16.msra.mxu0 %v1141
    %1213 = vmatprep.subr.bf16.mxu0 %v1140
    %1214 = vmatpush1.bf16.msra.mxu0 %v1139
    %1215 = vmatprep.subr.bf16.mxu0 %v1138
    %1216 = vmatpush1.bf16.msra.mxu0 %v1137
    %1217 = vmatprep.subr.bf16.mxu0 %v1168
    %1218 = vmatpush2.bf16.msra.mxu0 %v1167
    %1219 = vmatprep.subr.bf16.mxu0 %v1166
    %1220 = vmatpush2.bf16.msra.mxu0 %v1165
    %1221 = vmatprep.subr.bf16.mxu0 %v1164
    %1222 = vmatpush2.bf16.msra.mxu0 %v1163
    %1223 = vmatprep.subr.bf16.mxu0 %v1162
    %1224 = vmatpush2.bf16.msra.mxu0 %v1161
    %1225 = vmatprep.subr.bf16.mxu0 %v1160
    %1226 = vmatpush2.bf16.msra.mxu0 %v1159
    %1227 = vmatprep.subr.bf16.mxu0 %v1158
    %1228 = vmatpush2.bf16.msra.mxu0 %v1157
    %1229 = vmatprep.subr.bf16.mxu0 %v1156
    %1230 = vmatpush2.bf16.msra.mxu0 %v1155
    %1231 = vmatprep.subr.bf16.mxu0 %v1154
    %1232 = vmatpush2.bf16.msra.mxu0 %v1153
    %1233 = vmatprep.mubr.bf16.mxu0 %v994
    %1234 = vmatmul.mubr.bf16.gmra.mxu0 %v993
    %v1235 = vpop.f32.mrf.mxu0
    %v1236 = vadd.f32 %v1034, %v1235
    %v1237 = vpop.f32.mrf.mxu0
    %v1238 = vadd.f32 %v1038, %v1237
    %v1239 = vpop.f32.mrf.mxu0
    %v1240 = vpop.f32.mrf.mxu0
    %1241 = vdwg.mxu0
    %vm1242 = vcmp.ge.f32.partialorder %v1236, 0.0
    %vm1243 = vcmp.ge.f32.partialorder %v1238, 0.0
    %v1244 = vmul.f32 %v1236, 0.1
    %v1245 = vmul.f32 %v1238, 0.1
    %v1246 = vsel %vm1242, %v1236, %v1244
    %v1247 = vsel %vm1243, %v1238, %v1245
    %v1248 = vpack.c.bf16 %v1246, %v1246
    %v1249 = vpack.c.bf16 %v1247, %v1247
    %s1250 = scalar_lea.vmem [#allocation6], 1280
    %v1251 = vld [vmem:[%s1250] sm:$0xff]
    %v1252 = vld [vmem:[%s1250 + $0x8] sm:$0xff]
    %v1253 = vld [vmem:[%s1250 + $0x10] sm:$0xff]
    %v1254 = vld [vmem:[%s1250 + $0x18] sm:$0xff]
    %v1255 = vld [vmem:[%s1250 + $0x20] sm:$0xff]
    %v1256 = vld [vmem:[%s1250 + $0x28] sm:$0xff]
    %v1257 = vld [vmem:[%s1250 + $0x30] sm:$0xff]
    %v1258 = vld [vmem:[%s1250 + $0x38] sm:$0xff]
    %v1259 = vld [vmem:[%s1250 + $0x40] sm:$0xff]
    %v1260 = vld [vmem:[%s1250 + $0x48] sm:$0xff]
    %v1261 = vld [vmem:[%s1250 + $0x50] sm:$0xff]
    %v1262 = vld [vmem:[%s1250 + $0x58] sm:$0xff]
    %v1263 = vld [vmem:[%s1250 + $0x60] sm:$0xff]
    %v1264 = vld [vmem:[%s1250 + $0x68] sm:$0xff]
    %v1265 = vld [vmem:[%s1250 + $0x70] sm:$0xff]
    %v1266 = vld [vmem:[%s1250 + $0x78] sm:$0xff]
    %v1267 = vld [vmem:[%s1250 + $0x80] sm:$0xff]
    %v1268 = vld [vmem:[%s1250 + $0x88] sm:$0xff]
    %v1269 = vld [vmem:[%s1250 + $0x90] sm:$0xff]
    %v1270 = vld [vmem:[%s1250 + $0x98] sm:$0xff]
    %v1271 = vld [vmem:[%s1250 + $0xa0] sm:$0xff]
    %v1272 = vld [vmem:[%s1250 + $0xa8] sm:$0xff]
    %v1273 = vld [vmem:[%s1250 + $0xb0] sm:$0xff]
    %v1274 = vld [vmem:[%s1250 + $0xb8] sm:$0xff]
    %v1275 = vld [vmem:[%s1250 + $0xc0] sm:$0xff]
    %v1276 = vld [vmem:[%s1250 + $0xc8] sm:$0xff]
    %v1277 = vld [vmem:[%s1250 + $0xd0] sm:$0xff]
    %v1278 = vld [vmem:[%s1250 + $0xd8] sm:$0xff]
    %v1279 = vld [vmem:[%s1250 + $0xe0] sm:$0xff]
    %v1280 = vld [vmem:[%s1250 + $0xe8] sm:$0xff]
    %v1281 = vld [vmem:[%s1250 + $0xf0] sm:$0xff]
    %v1282 = vld [vmem:[%s1250 + $0xf8] sm:$0xff]
    %s1283 = scalar_lea.vmem [#allocation7], 5
    %v1284 = vld [vmem:[%s1283] ss:$8 sm:$0x3]
    %v1286 = vlaneseq
    %v1287 = vshrl.u32 %v1286, 7
    %v1288 = vsub.s32 0, %v1287
    %v1289 = vrot.slane %v1284, %v1288
    %v1323 = vunpack.c.l.b16 %v1251
    %v1324 = vunpack.c.h.b16 %v1251
    %v1325 = vunpack.c.l.b16 %v1252
    %v1326 = vunpack.c.h.b16 %v1252
    %v1327 = vunpack.c.l.b16 %v1253
    %v1328 = vunpack.c.h.b16 %v1253
    %v1329 = vunpack.c.l.b16 %v1254
    %v1330 = vunpack.c.h.b16 %v1254
    %v1331 = vunpack.c.l.b16 %v1255
    %v1332 = vunpack.c.h.b16 %v1255
    %v1333 = vunpack.c.l.b16 %v1256
    %v1334 = vunpack.c.h.b16 %v1256
    %v1335 = vunpack.c.l.b16 %v1257
    %v1336 = vunpack.c.h.b16 %v1257
    %v1337 = vunpack.c.l.b16 %v1258
    %v1338 = vunpack.c.h.b16 %v1258
    %v1339 = vunpack.c.l.b16 %v1259
    %v1340 = vunpack.c.h.b16 %v1259
    %v1341 = vunpack.c.l.b16 %v1260
    %v1342 = vunpack.c.h.b16 %v1260
    %v1343 = vunpack.c.l.b16 %v1261
    %v1344 = vunpack.c.h.b16 %v1261
    %v1345 = vunpack.c.l.b16 %v1262
    %v1346 = vunpack.c.h.b16 %v1262
    %v1347 = vunpack.c.l.b16 %v1263
    %v1348 = vunpack.c.h.b16 %v1263
    %v1349 = vunpack.c.l.b16 %v1264
    %v1350 = vunpack.c.h.b16 %v1264
    %v1351 = vunpack.c.l.b16 %v1265
    %v1352 = vunpack.c.h.b16 %v1265
    %v1353 = vunpack.c.l.b16 %v1266
    %v1354 = vunpack.c.h.b16 %v1266
    %v1355 = vunpack.c.l.b16 %v1267
    %v1356 = vunpack.c.h.b16 %v1267
    %v1357 = vunpack.c.l.b16 %v1268
    %v1358 = vunpack.c.h.b16 %v1268
    %v1359 = vunpack.c.l.b16 %v1269
    %v1360 = vunpack.c.h.b16 %v1269
    %v1361 = vunpack.c.l.b16 %v1270
    %v1362 = vunpack.c.h.b16 %v1270
    %v1363 = vunpack.c.l.b16 %v1271
    %v1364 = vunpack.c.h.b16 %v1271
    %v1365 = vunpack.c.l.b16 %v1272
    %v1366 = vunpack.c.h.b16 %v1272
    %v1367 = vunpack.c.l.b16 %v1273
    %v1368 = vunpack.c.h.b16 %v1273
    %v1369 = vunpack.c.l.b16 %v1274
    %v1370 = vunpack.c.h.b16 %v1274
    %v1371 = vunpack.c.l.b16 %v1275
    %v1372 = vunpack.c.h.b16 %v1275
    %v1373 = vunpack.c.l.b16 %v1276
    %v1374 = vunpack.c.h.b16 %v1276
    %v1375 = vunpack.c.l.b16 %v1277
    %v1376 = vunpack.c.h.b16 %v1277
    %v1377 = vunpack.c.l.b16 %v1278
    %v1378 = vunpack.c.h.b16 %v1278
    %v1379 = vunpack.c.l.b16 %v1279
    %v1380 = vunpack.c.h.b16 %v1279
    %v1381 = vunpack.c.l.b16 %v1280
    %v1382 = vunpack.c.h.b16 %v1280
    %v1383 = vunpack.c.l.b16 %v1281
    %v1384 = vunpack.c.h.b16 %v1281
    %v1385 = vunpack.c.l.b16 %v1282
    %v1386 = vunpack.c.h.b16 %v1282
    %v1387 = vpack.c.b16 %v1325, %v1323
    %v1388 = vpack.c.b16 %v1326, %v1324
    %v1389 = vpack.c.b16 %v1329, %v1327
    %v1390 = vpack.c.b16 %v1330, %v1328
    %v1391 = vpack.c.b16 %v1333, %v1331
    %v1392 = vpack.c.b16 %v1334, %v1332
    %v1393 = vpack.c.b16 %v1337, %v1335
    %v1394 = vpack.c.b16 %v1338, %v1336
    %v1395 = vpack.c.b16 %v1341, %v1339
    %v1396 = vpack.c.b16 %v1342, %v1340
    %v1397 = vpack.c.b16 %v1345, %v1343
    %v1398 = vpack.c.b16 %v1346, %v1344
    %v1399 = vpack.c.b16 %v1349, %v1347
    %v1400 = vpack.c.b16 %v1350, %v1348
    %v1401 = vpack.c.b16 %v1353, %v1351
    %v1402 = vpack.c.b16 %v1354, %v1352
    %v1403 = vpack.c.b16 %v1357, %v1355
    %v1404 = vpack.c.b16 %v1358, %v1356
    %v1405 = vpack.c.b16 %v1361, %v1359
    %v1406 = vpack.c.b16 %v1362, %v1360
    %v1407 = vpack.c.b16 %v1365, %v1363
    %v1408 = vpack.c.b16 %v1366, %v1364
    %v1409 = vpack.c.b16 %v1369, %v1367
    %v1410 = vpack.c.b16 %v1370, %v1368
    %v1411 = vpack.c.b16 %v1373, %v1371
    %v1412 = vpack.c.b16 %v1374, %v1372
    %v1413 = vpack.c.b16 %v1377, %v1375
    %v1414 = vpack.c.b16 %v1378, %v1376
    %v1415 = vpack.c.b16 %v1381, %v1379
    %v1416 = vpack.c.b16 %v1382, %v1380
    %v1417 = vpack.c.b16 %v1385, %v1383
    %v1418 = vpack.c.b16 %v1386, %v1384
    %1451 = vmatprep.subr.bf16.mxu0 %v1402
    %1452 = vmatpush1.bf16.msra.mxu0 %v1401
    %1453 = vmatprep.subr.bf16.mxu0 %v1400
    %1454 = vmatpush1.bf16.msra.mxu0 %v1399
    %1455 = vmatprep.subr.bf16.mxu0 %v1398
    %1456 = vmatpush1.bf16.msra.mxu0 %v1397
    %1457 = vmatprep.subr.bf16.mxu0 %v1396
    %1458 = vmatpush1.bf16.msra.mxu0 %v1395
    %1459 = vmatprep.subr.bf16.mxu0 %v1394
    %1460 = vmatpush1.bf16.msra.mxu0 %v1393
    %1461 = vmatprep.subr.bf16.mxu0 %v1392
    %1462 = vmatpush1.bf16.msra.mxu0 %v1391
    %1463 = vmatprep.subr.bf16.mxu0 %v1390
    %1464 = vmatpush1.bf16.msra.mxu0 %v1389
    %1465 = vmatprep.subr.bf16.mxu0 %v1388
    %1466 = vmatpush1.bf16.msra.mxu0 %v1387
    %1467 = vmatprep.subr.bf16.mxu0 %v1418
    %1468 = vmatpush2.bf16.msra.mxu0 %v1417
    %1469 = vmatprep.subr.bf16.mxu0 %v1416
    %1470 = vmatpush2.bf16.msra.mxu0 %v1415
    %1471 = vmatprep.subr.bf16.mxu0 %v1414
    %1472 = vmatpush2.bf16.msra.mxu0 %v1413
    %1473 = vmatprep.subr.bf16.mxu0 %v1412
    %1474 = vmatpush2.bf16.msra.mxu0 %v1411
    %1475 = vmatprep.subr.bf16.mxu0 %v1410
    %1476 = vmatpush2.bf16.msra.mxu0 %v1409
    %1477 = vmatprep.subr.bf16.mxu0 %v1408
    %1478 = vmatpush2.bf16.msra.mxu0 %v1407
    %1479 = vmatprep.subr.bf16.mxu0 %v1406
    %1480 = vmatpush2.bf16.msra.mxu0 %v1405
    %1481 = vmatprep.subr.bf16.mxu0 %v1404
    %1482 = vmatpush2.bf16.msra.mxu0 %v1403
    %1483 = vmatprep.mubr.bf16.mxu0 %v1249
    %1484 = vmatmul.mubr.bf16.gmra.mxu0 %v1248
    %v1485 = vpop.f32.mrf.mxu0
    %v1486 = vadd.f32 %v1289, %v1485
    %v1487 = vpop.f32.mrf.mxu0
    %v1488 = vpop.f32.mrf.mxu0
    %v1489 = vpop.f32.mrf.mxu0
    %1490 = vdwg.mxu0
    %v1491 = vxor.u32 %v1486, 2147483648
    %v1492 = vmul.f32 %v1491, 1.442695
    %v1493 = vpow.pop %v1492
    %v1494 = vadd.f32 %v1493, 1.0
    %v1495 = vrcp.pop %v1494
    %v1496 = vmul.f32 1.0, %v1495
    %v1497 = vlaneseq
    %v1498 = vand.u32 %v1497, 127
    %vm1499 = vcmp.lt.s32.totalorder %v1498, 16
    %vm1500 = vcmp.ge.s32.totalorder %v1498, 48
    %vm1501 = vcmp.lt.s32.totalorder %v1498, 64
    %vm1502 = vmand %vm1500, %vm1501
    %vm1503 = vmor %vm1499, %vm1502
    %v1504 = vsel %vm1503, %v726, %v1496
    %1505 = vst [vmem:[%s4] sm:$0xff] %v1504
    // Predicated region
    $region34: #{ae_forward.1} parent=1 // pred_check
      _
    $region35: #{ae_forward.1} parent=1 // pred_check_branch
      %1507 = sbr.rel (0) target = $region37
    $region36: #{ae_forward.1} parent=1 // pred_region
      _
    $region37: #{ae_forward.1} parent=1 // pred_fallthru
      _
    // Predicated region
    $region38: #{ae_forward.1} parent=1 // pred_check
      _
    $region39: #{ae_forward.1} parent=1 // pred_check_branch
      %1509 = sbr.rel (0) target = $region41
    $region40: #{ae_forward.1} parent=1 // pred_region
      _
    $region41: #{ae_forward.1} parent=1 // pred_fallthru
      _
    %1510 = vsyncpa [#allocation3], 1
    %1511 = vsyncpa [#allocation5], 1
    %1512 = vsyncpa [#allocation8], 1

</llo_original>
